<compile_context>
chip_gen: v6e
topology: v6e:2x2x1
jax: 0.10.0
libtpu: 0.0.40
codegen_flags: <defaults>
</compile_context>

<pallas_src>
import functools

import jax
import jax.numpy as jnp
from jax.experimental import pallas as pl
from jax.experimental.pallas import tpu as pltpu


# ----------------------------- kernel helpers ------------------------------


def _ff(x, w1, b1, w2, b2):
    # FeedForwardLayer: 1x1 conv == matmul over features, LeakyReLU(0.2), 1x1 conv.
    # bf16 MXU inputs, f32 accumulation; bias adds and activation in f32.
    h = jnp.dot(x.astype(jnp.bfloat16), w1,
                preferred_element_type=jnp.float32) + b1
    h = jnp.maximum(h, 0.2 * h)                       # LeakyReLU(0.2)
    return jnp.dot(h.astype(jnp.bfloat16), w2,
                   preferred_element_type=jnp.float32) + b2


def _layernorm(x, gamma, beta, eps=1e-6):
    mu = jnp.mean(x, axis=-1, keepdims=True)
    var = jnp.mean((x - mu) ** 2, axis=-1, keepdims=True)
    return (x - mu) * jax.lax.rsqrt(var + eps) * gamma + beta


# ------------------------------- the kernel --------------------------------


def pma_kernel(z_ref, mask_ref, tile_ref, ritem_ref, citem_ref, qs_ref, st_ref,
               wk_ref, wv_ref, wo_ref,
               r1_w1, r1_b1, r1_w2, r1_b2,
               r2_w1, r2_b1, r2_w2, r2_b2,
               ln1_g, ln1_b, ln2_g, ln2_b,
               pad_ref, out_ref, *, n_heads):
    # z_ref    : (1, Bblk*L, d)        bf16  positions of the batch block, flattened
    # mask_ref : (1, H*Bblk*k, L)      bf16  per-item {0,1} key mask, tiled over heads
    # tile_ref : (L, Bblk*L)           bf16  static scatter: tile[l, c] = (c % L == l)
    # ritem_ref: (H*Bblk*k, 1)         i32   item index of each stacked query row
    # citem_ref: (1, Bblk*L)           i32   item index of each key column
    # qs_ref   : (H*Bblk*k, d)         bf16  head-stacked, band-masked, pre-scaled Q
    # st_ref   : (Bblk*k, d)           f32   seed vectors S^T tiled over the block
    # pad_ref  : (d, d_pad)            bf16  [I | 0] lane-padding projection
    # out_ref  : (1, Bblk*k, d_pad)    bf16
    f32, bf16 = jnp.float32, jnp.bfloat16
    bk, d = st_ref.shape
    chunk = d // n_heads

    z = z_ref[0]                                      # (Bblk*L, d) bf16
    s_tiled = st_ref[...]                             # (Bblk*k, d) f32

    # ---- rFF1(Z), flattened over the whole batch block ----
    e = _ff(z, r1_w1[...], r1_b1[...], r1_w2[...], r1_b2[...])          # (BL, d) f32

    # ---- fused K / V projections: full-width (d, d) bf16 matmuls ----
    e16 = e.astype(bf16)
    k_all = jnp.dot(e16, wk_ref[...],
                    preferred_element_type=f32).astype(bf16)            # (BL, d)
    v_all = jnp.dot(e16, wv_ref[...],
                    preferred_element_type=f32).astype(bf16)            # (BL, d)

    # ---- block-diagonal mask, rebuilt in-kernel from linear-size inputs:
    #      one small MXU matmul spreads each item's L-wide mask across its own key
    #      columns; a broadcast int compare keeps only the diagonal blocks. ----
    m_tiled = jnp.dot(mask_ref[0], tile_ref[...],
                      preferred_element_type=f32)                       # (HBk, BL)
    mbool = (ritem_ref[...] == citem_ref[...]) & (m_tiled > 0.5)        # (HBk, BL)

    # ---- one head-stacked QK^T -> masked softmax -> PV pass ----
    a = jax.lax.dot_general(qs_ref[...], k_all, (((1,), (1,)), ((), ())),
                            preferred_element_type=f32)                 # (HBk, BL)
    a = jnp.where(mbool, a, -1e30)
    ex = jnp.where(mbool, jnp.exp(a - jnp.max(a, axis=-1, keepdims=True)), 0.0)
    denom = jnp.sum(ex, axis=-1, keepdims=True)
    # fully-masked rows: denom == 0 -> probabilities 0 (torch NaN -> 0 path)
    p = ex * pl.reciprocal(jnp.maximum(denom, 1e-30), approx=True)
    pv = jnp.dot(p.astype(bf16), v_all,
                 preferred_element_type=f32)                            # (HBk, d)

    # ---- recombine heads: lane-band select of each head's sublane block ----
    lane = jax.lax.broadcasted_iota(jnp.int32, (1, d), 1)
    ctx = jnp.zeros((bk, d), f32)
    for h in range(n_heads):
        sel = (lane >= h * chunk) & (lane < (h + 1) * chunk)
        ctx = ctx + jnp.where(sel, pv[h * bk:(h + 1) * bk, :], 0.0)

    attn = jnp.dot(ctx.astype(bf16), wo_ref[...],
                   preferred_element_type=f32)                          # (Bk, d)

    # ---- H = LN1(S + attn);  E = LN2(H + rFF2(H)) (f32 VPU math) ----
    h1 = _layernorm(s_tiled + attn, ln1_g[...], ln1_b[...])
    e2 = _layernorm(h1 + _ff(h1, r2_w1[...], r2_b1[...], r2_w2[...], r2_b2[...]),
                    ln2_g[...], ln2_b[...])

    # ---- lane-dense (unmasked) bf16 store: exact [I | 0] projection pads d -> d_pad
    out_ref[0] = jnp.dot(e2.astype(bf16), pad_ref[...],
                         preferred_element_type=f32).astype(out_ref.dtype)


# ------------------------------ wrapper / glue ------------------------------


def _tensorcores_per_chip():
    # 2 TensorCores per chip on v7x (and megacore v4/v5p); 1 on v5e/v6e.
    try:
        kind = jax.devices()[0].device_kind.lower()
    except Exception:
        return 1
    return 2 if ("v7" in kind or "v4" in kind or "v5p" in kind) else 1


def _pick_batch_block(batch, n_cores, cap=32):
    # Largest divisor of `batch` <= cap (bounds the Bblk^2 block-diag QK^T waste and
    # keeps the working set well under v7x's 64 MiB VMEM).  On single-TC chips this
    # gives a single grid step whenever batch <= cap; with 2 TCs, split in two so both
    # cores get work.
    bb = next(d for d in range(min(batch, cap), 0, -1) if batch % d == 0)
    if n_cores > 1 and batch // bb < n_cores and batch % n_cores == 0:
        bb = batch // n_cores
    return bb


def pma_forward(z, mask, params, n_heads=8, batch_block=None):
    """z: (B, n_units, L) f32, mask: (B, k, L) bool  ->  (B, n_units, k) f32."""
    B, d, L = z.shape
    k = params["S"].shape[1]
    assert d % n_heads == 0
    chunk = d // n_heads

    if batch_block is None:
        batch_block = _pick_batch_block(B, _tensorcores_per_chip())
    assert B % batch_block == 0
    grid_b = B // batch_block
    Bk, BL = batch_block * k, batch_block * L
    HBk = n_heads * Bk
    d_pad = ((d + 127) // 128) * 128

    f32, bf16, i32 = jnp.float32, jnp.bfloat16, jnp.int32

    # NLC layout (features on the lane axis), batch block flattened into rows.
    z_t = (jnp.transpose(z, (0, 2, 1))
           .reshape(grid_b, BL, d).astype(bf16))

    # Per-item key mask (linear in batch_block), tiled over heads to match the
    # head-stacked query rows.  No O(batch_block^2) array is ever written to HBM.
    m2 = mask.reshape(grid_b, batch_block, k, L).reshape(grid_b, Bk, L)
    mask2h = (jnp.broadcast_to(m2[:, None], (grid_b, n_heads, Bk, L))
              .reshape(grid_b, HBk, L).astype(bf16))

    # Static helpers for the in-kernel block-diagonal mask rebuild.
    tile_mat = jnp.tile(jnp.eye(L, dtype=f32), (1, batch_block)).astype(bf16)  # (L, BL)
    row_item = jnp.tile(jnp.repeat(jnp.arange(batch_block, dtype=i32), k),
                        n_heads).reshape(HBk, 1)
    col_item = jnp.repeat(jnp.arange(batch_block, dtype=i32), L).reshape(1, BL)

    # Q = (S^T Wq) * scale is parameter-only: precompute, pre-scale, head-band-mask and
    # head-stack it in the wrapper (one-time grid-invariant DMA, no Wq inside).
    scale = 1.0 / (chunk ** 0.5)
    qp = (params["S"].T.astype(f32) @ params["p_wq"].astype(f32)) * scale        # (k, d)
    band = ((jnp.arange(d) // chunk)[None, :] ==
            jnp.arange(n_heads)[:, None]).astype(f32)                            # (H, d)
    q_stack = (jnp.broadcast_to((qp[None] * band[:, None, :])[:, None],
                                (n_heads, batch_block, k, d))
               .reshape(HBk, d).astype(bf16))

    s_tiled = jnp.tile(params["S"].T.astype(f32), (batch_block, 1))              # (Bk, d)

    param_arrays = [
        tile_mat, row_item, col_item, q_stack, s_tiled,
        params["p_wk"].astype(bf16), params["p_wv"].astype(bf16),
        params["p_wo"].astype(bf16),
        params["r1_w1"].astype(bf16), params["r1_b1"].astype(f32),
        params["r1_w2"].astype(bf16), params["r1_b2"].astype(f32),
        params["r2_w1"].astype(bf16), params["r2_b1"].astype(f32),
        params["r2_w2"].astype(bf16), params["r2_b2"].astype(f32),
        params["ln1_g"].astype(f32), params["ln1_b"].astype(f32),
        params["ln2_g"].astype(f32), params["ln2_b"].astype(f32),
        jnp.eye(d, d_pad, dtype=f32).astype(bf16),                               # [I | 0]
    ]

    in_specs = (
        [pl.BlockSpec((1, BL, d), lambda g: (g, 0, 0)),
         pl.BlockSpec((1, HBk, L), lambda g: (g, 0, 0))]
        # NOTE: for large d, add pipeline_mode=pl.Buffered(1) to these grid-invariant
        # blocks to single-buffer them (negligible at d=32 with a <=2-step grid).
        + [pl.BlockSpec(a.shape, lambda g: (0, 0)) for a in param_arrays]
    )
    out_spec = pl.BlockSpec((1, Bk, d_pad), lambda g: (g, 0, 0))

    # CostEstimate reflecting executed (block-diagonal, head-stacked) work.
    flops_step = (16 * BL * d * d            # rFF1
                  + 4 * BL * d * d           # K, V projections
                  + 2 * HBk * L * BL         # mask scatter matmul
                  + 2 * HBk * d * BL         # head-stacked QK^T
                  + 2 * HBk * BL * d         # PV
                  + 2 * Bk * d * d           # output projection
                  + 16 * Bk * d * d          # rFF2
                  + 2 * Bk * d * d_pad)      # lane-pad projection
    transc_step = HBk * BL + HBk + 2 * Bk
    bytes_accessed = int(z_t.size * 2 + mask2h.size * 2
                         + grid_b * Bk * d_pad * 2
                         + sum(int(a.size) * a.dtype.itemsize for a in param_arrays))

    out = pl.pallas_call(
        functools.partial(pma_kernel, n_heads=n_heads),
        grid=(grid_b,),
        in_specs=in_specs,
        out_specs=out_spec,
        out_shape=jax.ShapeDtypeStruct((grid_b, Bk, d_pad), bf16),
        compiler_params=pltpu.CompilerParams(
            dimension_semantics=("parallel",),
            vmem_limit_bytes=32 * 1024 * 1024),
        cost_estimate=pl.CostEstimate(
            flops=int(grid_b * flops_step),
            transcendentals=int(grid_b * transc_step),
            bytes_accessed=bytes_accessed),
    )(z_t, mask2h, *param_arrays)

    out = out.reshape(B, k, d_pad)[:, :, :d].astype(f32)   # drop lane padding, f32
    return jnp.transpose(out, (0, 2, 1))                   # (B, n_units, k) like PyTorch


# ----------------------- deterministic parameter init -----------------------


def make_params(key, d, k):
    keys = iter(jax.random.split(key, 32))

    def w(shape, scale=0.1):
        return (scale * jax.random.normal(next(keys), shape)).astype(jnp.float32)

    p = {"S": w((d, k), 1.0)}
    for name in ("p_wq", "p_wk", "p_wv", "p_wo"):   # cross-attn (bias-free)
        p[name] = w((d, d))
    for name in ("r1", "r2"):                       # rff_1, rff_2
        p[name + "_w1"] = w((d, 4 * d))
        p[name + "_b1"] = w((1, 4 * d))
        p[name + "_w2"] = w((4 * d, d))
        p[name + "_b2"] = w((1, d))
    for name in ("ln1", "ln2"):                     # layernorms (eps=1e-6)
        p[name + "_g"] = 1.0 + w((1, d))
        p[name + "_b"] = w((1, d))
    return p


# -------------------------- pure-JAX f32 reference --------------------------


def ref_forward(z, mask, params, n_heads=8):
    B, d, L = z.shape
    k = params["S"].shape[1]
    x = jnp.transpose(z, (0, 2, 1))  # (B, L, d)

    def ff(t, p):
        h = t @ params[p + "_w1"] + params[p + "_b1"]
        h = jnp.where(h > 0, h, 0.2 * h)
        return h @ params[p + "_w2"] + params[p + "_b2"]

    def ln(t, p):
        mu = t.mean(-1, keepdims=True)
        var = ((t - mu) ** 2).mean(-1, keepdims=True)
        return (t - mu) / jnp.sqrt(var + 1e-6) * params[p + "_g"] + params[p + "_b"]

    def mha(q, kv, m):
        c = d // n_heads
        scale = 1.0 / (c ** 0.5)
        Q = q @ params["p_wq"]
        K = kv @ params["p_wk"]
        V = kv @ params["p_wv"]
        Qh = Q.reshape(B, -1, n_heads, c)
        Kh = K.reshape(B, -1, n_heads, c)
        Vh = V.reshape(B, -1, n_heads, c)
        A = jnp.einsum("bqhc,bkhc->bhqk", Qh, Kh) * scale
        A = jnp.where(m[:, None], A, -jnp.inf)
        P = jax.nn.softmax(A, axis=-1)
        P = jnp.where(jnp.isnan(P), 0.0, P)         # torch NaN -> 0 path
        C = jnp.einsum("bhqk,bkhc->bqhc", P, Vh).reshape(B, -1, d)
        return C @ params["p_wo"]

    s = jnp.broadcast_to(params["S"].T[None], (B, k, d))
    e = ff(x, "r1")
    h = ln(s + mha(s, e, mask), "ln1")
    e = ln(h + ff(h, "r2"), "ln2")
    return jnp.transpose(e, (0, 2, 1))              # (B, n_units, k)


# ----------------------------------- main -----------------------------------

if __name__ == "__main__":
    # TODO(synk): only the default PMA path (s=None, softmax attention, identity
    # attn-norm) is implemented; the 'relu' activation / normalize_attn / explicit-s
    # variants of MultiHeadAttention are not covered by this kernel.
    B, d, L, k, H = 4, 32, 16, 4, 8   # batch, n_units, set size, n_output_instances, heads
    key = jax.random.PRNGKey(0)
    kparam, kz, km = jax.random.split(key, 3)

    params = make_params(kparam, d, k)
    z = jax.random.normal(kz, (B, d, L), dtype=jnp.float32)
    mask = jax.random.bernoulli(km, 0.85, (B, k, L))
    mask = mask.at[0, 0, :].set(False)   # exercise the fully-masked-row (NaN->0) path

    out = pma_forward(z, mask, params, n_heads=H)
    out = jax.block_until_ready(out)

    ref = ref_forward(z, mask, params, n_heads=H)
    assert out.shape == (B, d, k), out.shape
    max_err = float(jnp.max(jnp.abs(out - ref)))
    # bf16 MXU inputs with f32 accumulation; LayerNorm/softmax stay f32; bf16 store.
    assert jnp.allclose(out, ref, atol=4e-2, rtol=2e-2), max_err

    print("KERNEL_OK")
</pallas_src>

<mosaic_0001>
module attributes {stable_mosaic.version = 11 : i64} {
  func.func @pma_kernel(%arg0: i32, %arg1: memref<1x64x32xbf16, #tpu.memory_space<vmem>>, %arg2: memref<1x128x16xbf16, #tpu.memory_space<vmem>>, %arg3: memref<16x64xbf16, #tpu.memory_space<vmem>>, %arg4: memref<128x1xi32, #tpu.memory_space<vmem>>, %arg5: memref<1x64xi32, #tpu.memory_space<vmem>>, %arg6: memref<128x32xbf16, #tpu.memory_space<vmem>>, %arg7: memref<16x32xf32, #tpu.memory_space<vmem>>, %arg8: memref<32x32xbf16, #tpu.memory_space<vmem>>, %arg9: memref<32x32xbf16, #tpu.memory_space<vmem>>, %arg10: memref<32x32xbf16, #tpu.memory_space<vmem>>, %arg11: memref<32x128xbf16, #tpu.memory_space<vmem>>, %arg12: memref<1x128xf32, #tpu.memory_space<vmem>>, %arg13: memref<128x32xbf16, #tpu.memory_space<vmem>>, %arg14: memref<1x32xf32, #tpu.memory_space<vmem>>, %arg15: memref<32x128xbf16, #tpu.memory_space<vmem>>, %arg16: memref<1x128xf32, #tpu.memory_space<vmem>>, %arg17: memref<128x32xbf16, #tpu.memory_space<vmem>>, %arg18: memref<1x32xf32, #tpu.memory_space<vmem>>, %arg19: memref<1x32xf32, #tpu.memory_space<vmem>>, %arg20: memref<1x32xf32, #tpu.memory_space<vmem>>, %arg21: memref<1x32xf32, #tpu.memory_space<vmem>>, %arg22: memref<1x32xf32, #tpu.memory_space<vmem>>, %arg23: memref<32x128xbf16, #tpu.memory_space<vmem>>, %arg24: memref<1x16x128xbf16, #tpu.memory_space<vmem>>) attributes {dimension_semantics = [#tpu.dimension_semantics<parallel>], iteration_bounds = array<i64: 1>, scalar_prefetch = 0 : i64, scratch_operands = 0 : i64, tpu.core_type = #tpu.core_type<tc>, window_params = [{transform_indices = @transform_0, window_bounds = array<i64: 1, 64, 32>}, {transform_indices = @transform_1, window_bounds = array<i64: 1, 128, 16>}, {pipeline_mode = #tpu.pipeline_mode<synchronous>, transform_indices = @transform_2, window_bounds = array<i64: 16, 64>}, {pipeline_mode = #tpu.pipeline_mode<synchronous>, transform_indices = @transform_3, window_bounds = array<i64: 128, 1>}, {pipeline_mode = #tpu.pipeline_mode<synchronous>, transform_indices = @transform_4, window_bounds = array<i64: 1, 64>}, {pipeline_mode = #tpu.pipeline_mode<synchronous>, transform_indices = @transform_5, window_bounds = array<i64: 128, 32>}, {pipeline_mode = #tpu.pipeline_mode<synchronous>, transform_indices = @transform_6, window_bounds = array<i64: 16, 32>}, {pipeline_mode = #tpu.pipeline_mode<synchronous>, transform_indices = @transform_7, window_bounds = array<i64: 32, 32>}, {pipeline_mode = #tpu.pipeline_mode<synchronous>, transform_indices = @transform_8, window_bounds = array<i64: 32, 32>}, {pipeline_mode = #tpu.pipeline_mode<synchronous>, transform_indices = @transform_9, window_bounds = array<i64: 32, 32>}, {pipeline_mode = #tpu.pipeline_mode<synchronous>, transform_indices = @transform_10, window_bounds = array<i64: 32, 128>}, {pipeline_mode = #tpu.pipeline_mode<synchronous>, transform_indices = @transform_11, window_bounds = array<i64: 1, 128>}, {pipeline_mode = #tpu.pipeline_mode<synchronous>, transform_indices = @transform_12, window_bounds = array<i64: 128, 32>}, {pipeline_mode = #tpu.pipeline_mode<synchronous>, transform_indices = @transform_13, window_bounds = array<i64: 1, 32>}, {pipeline_mode = #tpu.pipeline_mode<synchronous>, transform_indices = @transform_14, window_bounds = array<i64: 32, 128>}, {pipeline_mode = #tpu.pipeline_mode<synchronous>, transform_indices = @transform_15, window_bounds = array<i64: 1, 128>}, {pipeline_mode = #tpu.pipeline_mode<synchronous>, transform_indices = @transform_16, window_bounds = array<i64: 128, 32>}, {pipeline_mode = #tpu.pipeline_mode<synchronous>, transform_indices = @transform_17, window_bounds = array<i64: 1, 32>}, {pipeline_mode = #tpu.pipeline_mode<synchronous>, transform_indices = @transform_18, window_bounds = array<i64: 1, 32>}, {pipeline_mode = #tpu.pipeline_mode<synchronous>, transform_indices = @transform_19, window_bounds = array<i64: 1, 32>}, {pipeline_mode = #tpu.pipeline_mode<synchronous>, transform_indices = @transform_20, window_bounds = array<i64: 1, 32>}, {pipeline_mode = #tpu.pipeline_mode<synchronous>, transform_indices = @transform_21, window_bounds = array<i64: 1, 32>}, {pipeline_mode = #tpu.pipeline_mode<synchronous>, transform_indices = @transform_22, window_bounds = array<i64: 32, 128>}, {transform_indices = @transform_23, window_bounds = array<i64: 1, 16, 128>}]} {
    %c0 = arith.constant 0 : index
    %c0_0 = arith.constant 0 : index
    %c0_1 = arith.constant 0 : index
    %0 = vector.load %arg1[%c0, %c0_0, %c0_1] : memref<1x64x32xbf16, #tpu.memory_space<vmem>>, vector<1x64x32xbf16>
    %1 = vector.shape_cast %0 : vector<1x64x32xbf16> to vector<64x32xbf16>
    %c0_2 = arith.constant 0 : index
    %c0_3 = arith.constant 0 : index
    %2 = vector.load %arg7[%c0_2, %c0_3] : memref<16x32xf32, #tpu.memory_space<vmem>>, vector<16x32xf32>
    %c0_4 = arith.constant 0 : index
    %c0_5 = arith.constant 0 : index
    %3 = vector.load %arg11[%c0_4, %c0_5] : memref<32x128xbf16, #tpu.memory_space<vmem>>, vector<32x128xbf16>
    %c0_6 = arith.constant 0 : index
    %c0_7 = arith.constant 0 : index
    %4 = vector.load %arg12[%c0_6, %c0_7] : memref<1x128xf32, #tpu.memory_space<vmem>>, vector<1x128xf32>
    %c0_8 = arith.constant 0 : index
    %c0_9 = arith.constant 0 : index
    %5 = vector.load %arg13[%c0_8, %c0_9] : memref<128x32xbf16, #tpu.memory_space<vmem>>, vector<128x32xbf16>
    %c0_10 = arith.constant 0 : index
    %c0_11 = arith.constant 0 : index
    %6 = vector.load %arg14[%c0_10, %c0_11] : memref<1x32xf32, #tpu.memory_space<vmem>>, vector<1x32xf32>
    %cst = arith.constant dense<0.000000e+00> : vector<64x128xf32>
    %7 = tpu.matmul %1, %3, %cst {dimension_numbers = #tpu.dot_dimension_numbers<[1], [0], [0], [1], [0, 0, 1, 1], [], []>} : vector<64x32xbf16>, vector<32x128xbf16>, vector<64x128xf32> -> vector<64x128xf32>
    %8 = vector.broadcast %4 : vector<1x128xf32> to vector<64x128xf32>
    %9 = arith.addf %7, %8 : vector<64x128xf32>
    %cst_12 = arith.constant 2.000000e-01 : f32
    %10 = vector.broadcast %cst_12 : f32 to vector<64x128xf32>
    %11 = arith.mulf %10, %9 : vector<64x128xf32>
    %12 = arith.maximumf %9, %11 : vector<64x128xf32>
    %13 = arith.truncf %12 : vector<64x128xf32> to vector<64x128xbf16>
    %cst_13 = arith.constant dense<0.000000e+00> : vector<64x32xf32>
    %14 = tpu.matmul %13, %5, %cst_13 {dimension_numbers = #tpu.dot_dimension_numbers<[1], [0], [0], [1], [0, 0, 1, 1], [], []>} : vector<64x128xbf16>, vector<128x32xbf16>, vector<64x32xf32> -> vector<64x32xf32>
    %15 = vector.broadcast %6 : vector<1x32xf32> to vector<64x32xf32>
    %16 = arith.addf %14, %15 : vector<64x32xf32>
    %17 = arith.truncf %16 : vector<64x32xf32> to vector<64x32xbf16>
    %c0_14 = arith.constant 0 : index
    %c0_15 = arith.constant 0 : index
    %18 = vector.load %arg8[%c0_14, %c0_15] : memref<32x32xbf16, #tpu.memory_space<vmem>>, vector<32x32xbf16>
    %cst_16 = arith.constant dense<0.000000e+00> : vector<64x32xf32>
    %19 = tpu.matmul %17, %18, %cst_16 {dimension_numbers = #tpu.dot_dimension_numbers<[1], [0], [0], [1], [0, 0, 1, 1], [], []>} : vector<64x32xbf16>, vector<32x32xbf16>, vector<64x32xf32> -> vector<64x32xf32>
    %20 = arith.truncf %19 : vector<64x32xf32> to vector<64x32xbf16>
    %c0_17 = arith.constant 0 : index
    %c0_18 = arith.constant 0 : index
    %21 = vector.load %arg9[%c0_17, %c0_18] : memref<32x32xbf16, #tpu.memory_space<vmem>>, vector<32x32xbf16>
    %cst_19 = arith.constant dense<0.000000e+00> : vector<64x32xf32>
    %22 = tpu.matmul %17, %21, %cst_19 {dimension_numbers = #tpu.dot_dimension_numbers<[1], [0], [0], [1], [0, 0, 1, 1], [], []>} : vector<64x32xbf16>, vector<32x32xbf16>, vector<64x32xf32> -> vector<64x32xf32>
    %23 = arith.truncf %22 : vector<64x32xf32> to vector<64x32xbf16>
    %c0_20 = arith.constant 0 : index
    %c0_21 = arith.constant 0 : index
    %c0_22 = arith.constant 0 : index
    %24 = vector.load %arg2[%c0_20, %c0_21, %c0_22] : memref<1x128x16xbf16, #tpu.memory_space<vmem>>, vector<1x128x16xbf16>
    %25 = vector.shape_cast %24 : vector<1x128x16xbf16> to vector<128x16xbf16>
    %c0_23 = arith.constant 0 : index
    %c0_24 = arith.constant 0 : index
    %26 = vector.load %arg3[%c0_23, %c0_24] : memref<16x64xbf16, #tpu.memory_space<vmem>>, vector<16x64xbf16>
    %cst_25 = arith.constant dense<0.000000e+00> : vector<128x64xf32>
    %27 = tpu.matmul %25, %26, %cst_25 {dimension_numbers = #tpu.dot_dimension_numbers<[1], [0], [0], [1], [0, 0, 1, 1], [], []>} : vector<128x16xbf16>, vector<16x64xbf16>, vector<128x64xf32> -> vector<128x64xf32>
    %c0_26 = arith.constant 0 : index
    %c0_27 = arith.constant 0 : index
    %28 = vector.load %arg4[%c0_26, %c0_27] : memref<128x1xi32, #tpu.memory_space<vmem>>, vector<128x1xi32>
    %c0_28 = arith.constant 0 : index
    %c0_29 = arith.constant 0 : index
    %29 = vector.load %arg5[%c0_28, %c0_29] : memref<1x64xi32, #tpu.memory_space<vmem>>, vector<1x64xi32>
    %30 = vector.broadcast %28 : vector<128x1xi32> to vector<128x64xi32>
    %31 = vector.broadcast %29 : vector<1x64xi32> to vector<128x64xi32>
    %32 = arith.cmpi eq, %30, %31 : vector<128x64xi32>
    %cst_30 = arith.constant 5.000000e-01 : f32
    %33 = vector.broadcast %cst_30 : f32 to vector<128x64xf32>
    %34 = arith.cmpf ogt, %27, %33 : vector<128x64xf32>
    %35 = arith.andi %32, %34 : vector<128x64xi1>
    %c0_31 = arith.constant 0 : index
    %c0_32 = arith.constant 0 : index
    %36 = vector.load %arg6[%c0_31, %c0_32] : memref<128x32xbf16, #tpu.memory_space<vmem>>, vector<128x32xbf16>
    %cst_33 = arith.constant dense<0.000000e+00> : vector<128x64xf32>
    %37 = tpu.matmul %36, %20, %cst_33 {dimension_numbers = #tpu.dot_dimension_numbers<[1], [1], [0], [0], [0, 0, 1, 0], [], []>} : vector<128x32xbf16>, vector<64x32xbf16>, vector<128x64xf32> -> vector<128x64xf32>
    %cst_34 = arith.constant -1.000000e+30 : f32
    %38 = vector.broadcast %cst_34 : f32 to vector<128x64xf32>
    %39 = arith.select %35, %37, %38 : vector<128x64xi1>, vector<128x64xf32>
    %cst_35 = arith.constant dense<0xFF800000> : vector<128xf32>
    %40 = vector.multi_reduction <maximumf>, %39, %cst_35 [1] : vector<128x64xf32> to vector<128xf32>
    %41 = vector.shape_cast %40 : vector<128xf32> to vector<128x1xf32>
    %42 = vector.broadcast %41 : vector<128x1xf32> to vector<128x64xf32>
    %43 = arith.subf %39, %42 : vector<128x64xf32>
    %44 = math.exp %43 : vector<128x64xf32>
    %cst_36 = arith.constant 0.000000e+00 : f32
    %45 = vector.broadcast %cst_36 : f32 to vector<128x64xf32>
    %46 = arith.select %35, %44, %45 : vector<128x64xi1>, vector<128x64xf32>
    %cst_37 = arith.constant dense<0.000000e+00> : vector<128xf32>
    %47 = vector.multi_reduction <add>, %46, %cst_37 [1] : vector<128x64xf32> to vector<128xf32>
    %48 = vector.shape_cast %47 : vector<128xf32> to vector<128x1xf32>
    %cst_38 = arith.constant 1.000000e-30 : f32
    %49 = vector.broadcast %cst_38 : f32 to vector<128x1xf32>
    %50 = arith.maximumf %48, %49 : vector<128x1xf32>
    %51 = tpu.reciprocal %50 {approx = true} : vector<128x1xf32> -> vector<128x1xf32>
    %52 = vector.broadcast %51 : vector<128x1xf32> to vector<128x64xf32>
    %53 = arith.mulf %46, %52 : vector<128x64xf32>
    %54 = arith.truncf %53 : vector<128x64xf32> to vector<128x64xbf16>
    %cst_39 = arith.constant dense<0.000000e+00> : vector<128x32xf32>
    %55 = tpu.matmul %54, %23, %cst_39 {dimension_numbers = #tpu.dot_dimension_numbers<[1], [0], [0], [1], [0, 0, 1, 1], [], []>} : vector<128x64xbf16>, vector<64x32xbf16>, vector<128x32xf32> -> vector<128x32xf32>
    %56 = tpu.iota {dimensions = array<i32: 1>} : vector<1x32xi32>
    %cst_40 = arith.constant 0.000000e+00 : f32
    %57 = vector.broadcast %cst_40 : f32 to vector<16x32xf32>
    %c0_i32 = arith.constant 0 : i32
    %58 = vector.broadcast %c0_i32 : i32 to vector<1x32xi32>
    %59 = arith.cmpi sge, %56, %58 : vector<1x32xi32>
    %c4_i32 = arith.constant 4 : i32
    %60 = vector.broadcast %c4_i32 : i32 to vector<1x32xi32>
    %61 = arith.cmpi slt, %56, %60 : vector<1x32xi32>
    %62 = arith.andi %59, %61 : vector<1x32xi1>
    %63 = vector.extract_strided_slice %55 {offsets = [0, 0], sizes = [16, 32], strides = [1, 1]} : vector<128x32xf32> to vector<16x32xf32>
    %cst_41 = arith.constant 0.000000e+00 : f32
    %64 = vector.shape_cast %62 : vector<1x32xi1> to vector<1x32xi1>
    %65 = vector.broadcast %64 : vector<1x32xi1> to vector<16x32xi1>
    %66 = vector.broadcast %cst_41 : f32 to vector<16x32xf32>
    %67 = arith.select %65, %63, %66 : vector<16x32xi1>, vector<16x32xf32>
    %68 = arith.addf %57, %67 : vector<16x32xf32>
    %c4_i32_42 = arith.constant 4 : i32
    %69 = vector.broadcast %c4_i32_42 : i32 to vector<1x32xi32>
    %70 = arith.cmpi sge, %56, %69 : vector<1x32xi32>
    %c8_i32 = arith.constant 8 : i32
    %71 = vector.broadcast %c8_i32 : i32 to vector<1x32xi32>
    %72 = arith.cmpi slt, %56, %71 : vector<1x32xi32>
    %73 = arith.andi %70, %72 : vector<1x32xi1>
    %74 = vector.extract_strided_slice %55 {offsets = [16, 0], sizes = [16, 32], strides = [1, 1]} : vector<128x32xf32> to vector<16x32xf32>
    %cst_43 = arith.constant 0.000000e+00 : f32
    %75 = vector.shape_cast %73 : vector<1x32xi1> to vector<1x32xi1>
    %76 = vector.broadcast %75 : vector<1x32xi1> to vector<16x32xi1>
    %77 = vector.broadcast %cst_43 : f32 to vector<16x32xf32>
    %78 = arith.select %76, %74, %77 : vector<16x32xi1>, vector<16x32xf32>
    %79 = arith.addf %68, %78 : vector<16x32xf32>
    %c8_i32_44 = arith.constant 8 : i32
    %80 = vector.broadcast %c8_i32_44 : i32 to vector<1x32xi32>
    %81 = arith.cmpi sge, %56, %80 : vector<1x32xi32>
    %c12_i32 = arith.constant 12 : i32
    %82 = vector.broadcast %c12_i32 : i32 to vector<1x32xi32>
    %83 = arith.cmpi slt, %56, %82 : vector<1x32xi32>
    %84 = arith.andi %81, %83 : vector<1x32xi1>
    %85 = vector.extract_strided_slice %55 {offsets = [32, 0], sizes = [16, 32], strides = [1, 1]} : vector<128x32xf32> to vector<16x32xf32>
    %cst_45 = arith.constant 0.000000e+00 : f32
    %86 = vector.shape_cast %84 : vector<1x32xi1> to vector<1x32xi1>
    %87 = vector.broadcast %86 : vector<1x32xi1> to vector<16x32xi1>
    %88 = vector.broadcast %cst_45 : f32 to vector<16x32xf32>
    %89 = arith.select %87, %85, %88 : vector<16x32xi1>, vector<16x32xf32>
    %90 = arith.addf %79, %89 : vector<16x32xf32>
    %c12_i32_46 = arith.constant 12 : i32
    %91 = vector.broadcast %c12_i32_46 : i32 to vector<1x32xi32>
    %92 = arith.cmpi sge, %56, %91 : vector<1x32xi32>
    %c16_i32 = arith.constant 16 : i32
    %93 = vector.broadcast %c16_i32 : i32 to vector<1x32xi32>
    %94 = arith.cmpi slt, %56, %93 : vector<1x32xi32>
    %95 = arith.andi %92, %94 : vector<1x32xi1>
    %96 = vector.extract_strided_slice %55 {offsets = [48, 0], sizes = [16, 32], strides = [1, 1]} : vector<128x32xf32> to vector<16x32xf32>
    %cst_47 = arith.constant 0.000000e+00 : f32
    %97 = vector.shape_cast %95 : vector<1x32xi1> to vector<1x32xi1>
    %98 = vector.broadcast %97 : vector<1x32xi1> to vector<16x32xi1>
    %99 = vector.broadcast %cst_47 : f32 to vector<16x32xf32>
    %100 = arith.select %98, %96, %99 : vector<16x32xi1>, vector<16x32xf32>
    %101 = arith.addf %90, %100 : vector<16x32xf32>
    %c16_i32_48 = arith.constant 16 : i32
    %102 = vector.broadcast %c16_i32_48 : i32 to vector<1x32xi32>
    %103 = arith.cmpi sge, %56, %102 : vector<1x32xi32>
    %c20_i32 = arith.constant 20 : i32
    %104 = vector.broadcast %c20_i32 : i32 to vector<1x32xi32>
    %105 = arith.cmpi slt, %56, %104 : vector<1x32xi32>
    %106 = arith.andi %103, %105 : vector<1x32xi1>
    %107 = vector.extract_strided_slice %55 {offsets = [64, 0], sizes = [16, 32], strides = [1, 1]} : vector<128x32xf32> to vector<16x32xf32>
    %cst_49 = arith.constant 0.000000e+00 : f32
    %108 = vector.shape_cast %106 : vector<1x32xi1> to vector<1x32xi1>
    %109 = vector.broadcast %108 : vector<1x32xi1> to vector<16x32xi1>
    %110 = vector.broadcast %cst_49 : f32 to vector<16x32xf32>
    %111 = arith.select %109, %107, %110 : vector<16x32xi1>, vector<16x32xf32>
    %112 = arith.addf %101, %111 : vector<16x32xf32>
    %c20_i32_50 = arith.constant 20 : i32
    %113 = vector.broadcast %c20_i32_50 : i32 to vector<1x32xi32>
    %114 = arith.cmpi sge, %56, %113 : vector<1x32xi32>
    %c24_i32 = arith.constant 24 : i32
    %115 = vector.broadcast %c24_i32 : i32 to vector<1x32xi32>
    %116 = arith.cmpi slt, %56, %115 : vector<1x32xi32>
    %117 = arith.andi %114, %116 : vector<1x32xi1>
    %118 = vector.extract_strided_slice %55 {offsets = [80, 0], sizes = [16, 32], strides = [1, 1]} : vector<128x32xf32> to vector<16x32xf32>
    %cst_51 = arith.constant 0.000000e+00 : f32
    %119 = vector.shape_cast %117 : vector<1x32xi1> to vector<1x32xi1>
    %120 = vector.broadcast %119 : vector<1x32xi1> to vector<16x32xi1>
    %121 = vector.broadcast %cst_51 : f32 to vector<16x32xf32>
    %122 = arith.select %120, %118, %121 : vector<16x32xi1>, vector<16x32xf32>
    %123 = arith.addf %112, %122 : vector<16x32xf32>
    %c24_i32_52 = arith.constant 24 : i32
    %124 = vector.broadcast %c24_i32_52 : i32 to vector<1x32xi32>
    %125 = arith.cmpi sge, %56, %124 : vector<1x32xi32>
    %c28_i32 = arith.constant 28 : i32
    %126 = vector.broadcast %c28_i32 : i32 to vector<1x32xi32>
    %127 = arith.cmpi slt, %56, %126 : vector<1x32xi32>
    %128 = arith.andi %125, %127 : vector<1x32xi1>
    %129 = vector.extract_strided_slice %55 {offsets = [96, 0], sizes = [16, 32], strides = [1, 1]} : vector<128x32xf32> to vector<16x32xf32>
    %cst_53 = arith.constant 0.000000e+00 : f32
    %130 = vector.shape_cast %128 : vector<1x32xi1> to vector<1x32xi1>
    %131 = vector.broadcast %130 : vector<1x32xi1> to vector<16x32xi1>
    %132 = vector.broadcast %cst_53 : f32 to vector<16x32xf32>
    %133 = arith.select %131, %129, %132 : vector<16x32xi1>, vector<16x32xf32>
    %134 = arith.addf %123, %133 : vector<16x32xf32>
    %c28_i32_54 = arith.constant 28 : i32
    %135 = vector.broadcast %c28_i32_54 : i32 to vector<1x32xi32>
    %136 = arith.cmpi sge, %56, %135 : vector<1x32xi32>
    %c32_i32 = arith.constant 32 : i32
    %137 = vector.broadcast %c32_i32 : i32 to vector<1x32xi32>
    %138 = arith.cmpi slt, %56, %137 : vector<1x32xi32>
    %139 = arith.andi %136, %138 : vector<1x32xi1>
    %140 = vector.extract_strided_slice %55 {offsets = [112, 0], sizes = [16, 32], strides = [1, 1]} : vector<128x32xf32> to vector<16x32xf32>
    %cst_55 = arith.constant 0.000000e+00 : f32
    %141 = vector.shape_cast %139 : vector<1x32xi1> to vector<1x32xi1>
    %142 = vector.broadcast %141 : vector<1x32xi1> to vector<16x32xi1>
    %143 = vector.broadcast %cst_55 : f32 to vector<16x32xf32>
    %144 = arith.select %142, %140, %143 : vector<16x32xi1>, vector<16x32xf32>
    %145 = arith.addf %134, %144 : vector<16x32xf32>
    %146 = arith.truncf %145 : vector<16x32xf32> to vector<16x32xbf16>
    %c0_56 = arith.constant 0 : index
    %c0_57 = arith.constant 0 : index
    %147 = vector.load %arg10[%c0_56, %c0_57] : memref<32x32xbf16, #tpu.memory_space<vmem>>, vector<32x32xbf16>
    %cst_58 = arith.constant dense<0.000000e+00> : vector<16x32xf32>
    %148 = tpu.matmul %146, %147, %cst_58 {dimension_numbers = #tpu.dot_dimension_numbers<[1], [0], [0], [1], [0, 0, 1, 1], [], []>} : vector<16x32xbf16>, vector<32x32xbf16>, vector<16x32xf32> -> vector<16x32xf32>
    %149 = arith.addf %2, %148 : vector<16x32xf32>
    %c0_59 = arith.constant 0 : index
    %c0_60 = arith.constant 0 : index
    %150 = vector.load %arg19[%c0_59, %c0_60] : memref<1x32xf32, #tpu.memory_space<vmem>>, vector<1x32xf32>
    %c0_61 = arith.constant 0 : index
    %c0_62 = arith.constant 0 : index
    %151 = vector.load %arg20[%c0_61, %c0_62] : memref<1x32xf32, #tpu.memory_space<vmem>>, vector<1x32xf32>
    %cst_63 = arith.constant dense<0.000000e+00> : vector<16xf32>
    %152 = vector.multi_reduction <add>, %149, %cst_63 [1] : vector<16x32xf32> to vector<16xf32>
    %153 = vector.shape_cast %152 : vector<16xf32> to vector<16x1xf32>
    %cst_64 = arith.constant 3.200000e+01 : f32
    %154 = vector.broadcast %cst_64 : f32 to vector<16x1xf32>
    %155 = arith.divf %153, %154 : vector<16x1xf32>
    %156 = vector.broadcast %155 : vector<16x1xf32> to vector<16x32xf32>
    %157 = arith.subf %149, %156 : vector<16x32xf32>
    %158 = arith.mulf %157, %157 : vector<16x32xf32>
    %cst_65 = arith.constant dense<0.000000e+00> : vector<16xf32>
    %159 = vector.multi_reduction <add>, %158, %cst_65 [1] : vector<16x32xf32> to vector<16xf32>
    %160 = vector.shape_cast %159 : vector<16xf32> to vector<16x1xf32>
    %cst_66 = arith.constant 3.200000e+01 : f32
    %161 = vector.broadcast %cst_66 : f32 to vector<16x1xf32>
    %162 = arith.divf %160, %161 : vector<16x1xf32>
    %163 = vector.broadcast %155 : vector<16x1xf32> to vector<16x32xf32>
    %164 = arith.subf %149, %163 : vector<16x32xf32>
    %cst_67 = arith.constant 9.99999997E-7 : f32
    %165 = vector.broadcast %cst_67 : f32 to vector<16x1xf32>
    %166 = arith.addf %162, %165 : vector<16x1xf32>
    %167 = math.rsqrt %166 : vector<16x1xf32>
    %168 = vector.broadcast %167 : vector<16x1xf32> to vector<16x32xf32>
    %169 = arith.mulf %164, %168 : vector<16x32xf32>
    %170 = vector.broadcast %150 : vector<1x32xf32> to vector<16x32xf32>
    %171 = arith.mulf %169, %170 : vector<16x32xf32>
    %172 = vector.broadcast %151 : vector<1x32xf32> to vector<16x32xf32>
    %173 = arith.addf %171, %172 : vector<16x32xf32>
    %c0_68 = arith.constant 0 : index
    %c0_69 = arith.constant 0 : index
    %174 = vector.load %arg15[%c0_68, %c0_69] : memref<32x128xbf16, #tpu.memory_space<vmem>>, vector<32x128xbf16>
    %c0_70 = arith.constant 0 : index
    %c0_71 = arith.constant 0 : index
    %175 = vector.load %arg16[%c0_70, %c0_71] : memref<1x128xf32, #tpu.memory_space<vmem>>, vector<1x128xf32>
    %c0_72 = arith.constant 0 : index
    %c0_73 = arith.constant 0 : index
    %176 = vector.load %arg17[%c0_72, %c0_73] : memref<128x32xbf16, #tpu.memory_space<vmem>>, vector<128x32xbf16>
    %c0_74 = arith.constant 0 : index
    %c0_75 = arith.constant 0 : index
    %177 = vector.load %arg18[%c0_74, %c0_75] : memref<1x32xf32, #tpu.memory_space<vmem>>, vector<1x32xf32>
    %178 = arith.truncf %173 : vector<16x32xf32> to vector<16x32xbf16>
    %cst_76 = arith.constant dense<0.000000e+00> : vector<16x128xf32>
    %179 = tpu.matmul %178, %174, %cst_76 {dimension_numbers = #tpu.dot_dimension_numbers<[1], [0], [0], [1], [0, 0, 1, 1], [], []>} : vector<16x32xbf16>, vector<32x128xbf16>, vector<16x128xf32> -> vector<16x128xf32>
    %180 = vector.broadcast %175 : vector<1x128xf32> to vector<16x128xf32>
    %181 = arith.addf %179, %180 : vector<16x128xf32>
    %cst_77 = arith.constant 2.000000e-01 : f32
    %182 = vector.broadcast %cst_77 : f32 to vector<16x128xf32>
    %183 = arith.mulf %182, %181 : vector<16x128xf32>
    %184 = arith.maximumf %181, %183 : vector<16x128xf32>
    %185 = arith.truncf %184 : vector<16x128xf32> to vector<16x128xbf16>
    %cst_78 = arith.constant dense<0.000000e+00> : vector<16x32xf32>
    %186 = tpu.matmul %185, %176, %cst_78 {dimension_numbers = #tpu.dot_dimension_numbers<[1], [0], [0], [1], [0, 0, 1, 1], [], []>} : vector<16x128xbf16>, vector<128x32xbf16>, vector<16x32xf32> -> vector<16x32xf32>
    %187 = vector.broadcast %177 : vector<1x32xf32> to vector<16x32xf32>
    %188 = arith.addf %186, %187 : vector<16x32xf32>
    %189 = arith.addf %173, %188 : vector<16x32xf32>
    %c0_79 = arith.constant 0 : index
    %c0_80 = arith.constant 0 : index
    %190 = vector.load %arg21[%c0_79, %c0_80] : memref<1x32xf32, #tpu.memory_space<vmem>>, vector<1x32xf32>
    %c0_81 = arith.constant 0 : index
    %c0_82 = arith.constant 0 : index
    %191 = vector.load %arg22[%c0_81, %c0_82] : memref<1x32xf32, #tpu.memory_space<vmem>>, vector<1x32xf32>
    %cst_83 = arith.constant dense<0.000000e+00> : vector<16xf32>
    %192 = vector.multi_reduction <add>, %189, %cst_83 [1] : vector<16x32xf32> to vector<16xf32>
    %193 = vector.shape_cast %192 : vector<16xf32> to vector<16x1xf32>
    %cst_84 = arith.constant 3.200000e+01 : f32
    %194 = vector.broadcast %cst_84 : f32 to vector<16x1xf32>
    %195 = arith.divf %193, %194 : vector<16x1xf32>
    %196 = vector.broadcast %195 : vector<16x1xf32> to vector<16x32xf32>
    %197 = arith.subf %189, %196 : vector<16x32xf32>
    %198 = arith.mulf %197, %197 : vector<16x32xf32>
    %cst_85 = arith.constant dense<0.000000e+00> : vector<16xf32>
    %199 = vector.multi_reduction <add>, %198, %cst_85 [1] : vector<16x32xf32> to vector<16xf32>
    %200 = vector.shape_cast %199 : vector<16xf32> to vector<16x1xf32>
    %cst_86 = arith.constant 3.200000e+01 : f32
    %201 = vector.broadcast %cst_86 : f32 to vector<16x1xf32>
    %202 = arith.divf %200, %201 : vector<16x1xf32>
    %203 = vector.broadcast %195 : vector<16x1xf32> to vector<16x32xf32>
    %204 = arith.subf %189, %203 : vector<16x32xf32>
    %cst_87 = arith.constant 9.99999997E-7 : f32
    %205 = vector.broadcast %cst_87 : f32 to vector<16x1xf32>
    %206 = arith.addf %202, %205 : vector<16x1xf32>
    %207 = math.rsqrt %206 : vector<16x1xf32>
    %208 = vector.broadcast %207 : vector<16x1xf32> to vector<16x32xf32>
    %209 = arith.mulf %204, %208 : vector<16x32xf32>
    %210 = vector.broadcast %190 : vector<1x32xf32> to vector<16x32xf32>
    %211 = arith.mulf %209, %210 : vector<16x32xf32>
    %212 = vector.broadcast %191 : vector<1x32xf32> to vector<16x32xf32>
    %213 = arith.addf %211, %212 : vector<16x32xf32>
    %214 = arith.truncf %213 : vector<16x32xf32> to vector<16x32xbf16>
    %c0_88 = arith.constant 0 : index
    %c0_89 = arith.constant 0 : index
    %215 = vector.load %arg23[%c0_88, %c0_89] : memref<32x128xbf16, #tpu.memory_space<vmem>>, vector<32x128xbf16>
    %cst_90 = arith.constant dense<0.000000e+00> : vector<16x128xf32>
    %216 = tpu.matmul %214, %215, %cst_90 {dimension_numbers = #tpu.dot_dimension_numbers<[1], [0], [0], [1], [0, 0, 1, 1], [], []>} : vector<16x32xbf16>, vector<32x128xbf16>, vector<16x128xf32> -> vector<16x128xf32>
    %217 = arith.truncf %216 : vector<16x128xf32> to vector<16x128xbf16>
    %c0_91 = arith.constant 0 : index
    %c0_92 = arith.constant 0 : index
    %c0_93 = arith.constant 0 : index
    %218 = vector.load %arg24[%c0_91, %c0_92, %c0_93] : memref<1x16x128xbf16, #tpu.memory_space<vmem>>, vector<1x16x128xbf16>
    %219 = vector.shape_cast %218 : vector<1x16x128xbf16> to vector<16x128xbf16>
    %220 = vector.shape_cast %217 : vector<16x128xbf16> to vector<1x16x128xbf16>
    tpu.vector_store %arg24[%c0_91, %c0_92, %c0_93], %220 {strides = array<i32>} : memref<1x16x128xbf16, #tpu.memory_space<vmem>>, vector<1x16x128xbf16>,
    return
  }
  func.func @transform_0(%arg0: i32) -> (i32, i32, i32) {
    %c0_i32 = arith.constant 0 : i32
    %c0_i32_0 = arith.constant 0 : i32
    %c0_i32_1 = arith.constant 0 : i32
    return %arg0, %c0_i32, %c0_i32_0 : i32, i32, i32
  }
  func.func @transform_1(%arg0: i32) -> (i32, i32, i32) {
    %c0_i32 = arith.constant 0 : i32
    %c0_i32_0 = arith.constant 0 : i32
    %c0_i32_1 = arith.constant 0 : i32
    return %arg0, %c0_i32, %c0_i32_0 : i32, i32, i32
  }
  func.func @transform_2(%arg0: i32) -> (i32, i32) {
    %c0_i32 = arith.constant 0 : i32
    %c0_i32_0 = arith.constant 0 : i32
    %c0_i32_1 = arith.constant 0 : i32
    return %c0_i32, %c0_i32_0 : i32, i32
  }
  func.func @transform_3(%arg0: i32) -> (i32, i32) {
    %c0_i32 = arith.constant 0 : i32
    %c0_i32_0 = arith.constant 0 : i32
    %c0_i32_1 = arith.constant 0 : i32
    return %c0_i32, %c0_i32_0 : i32, i32
  }
  func.func @transform_4(%arg0: i32) -> (i32, i32) {
    %c0_i32 = arith.constant 0 : i32
    %c0_i32_0 = arith.constant 0 : i32
    %c0_i32_1 = arith.constant 0 : i32
    return %c0_i32, %c0_i32_0 : i32, i32
  }
  func.func @transform_5(%arg0: i32) -> (i32, i32) {
    %c0_i32 = arith.constant 0 : i32
    %c0_i32_0 = arith.constant 0 : i32
    %c0_i32_1 = arith.constant 0 : i32
    return %c0_i32, %c0_i32_0 : i32, i32
  }
  func.func @transform_6(%arg0: i32) -> (i32, i32) {
    %c0_i32 = arith.constant 0 : i32
    %c0_i32_0 = arith.constant 0 : i32
    %c0_i32_1 = arith.constant 0 : i32
    return %c0_i32, %c0_i32_0 : i32, i32
  }
  func.func @transform_7(%arg0: i32) -> (i32, i32) {
    %c0_i32 = arith.constant 0 : i32
    %c0_i32_0 = arith.constant 0 : i32
    %c0_i32_1 = arith.constant 0 : i32
    return %c0_i32, %c0_i32_0 : i32, i32
  }
  func.func @transform_8(%arg0: i32) -> (i32, i32) {
    %c0_i32 = arith.constant 0 : i32
    %c0_i32_0 = arith.constant 0 : i32
    %c0_i32_1 = arith.constant 0 : i32
    return %c0_i32, %c0_i32_0 : i32, i32
  }
  func.func @transform_9(%arg0: i32) -> (i32, i32) {
    %c0_i32 = arith.constant 0 : i32
    %c0_i32_0 = arith.constant 0 : i32
    %c0_i32_1 = arith.constant 0 : i32
    return %c0_i32, %c0_i32_0 : i32, i32
  }
  func.func @transform_10(%arg0: i32) -> (i32, i32) {
    %c0_i32 = arith.constant 0 : i32
    %c0_i32_0 = arith.constant 0 : i32
    %c0_i32_1 = arith.constant 0 : i32
    return %c0_i32, %c0_i32_0 : i32, i32
  }
  func.func @transform_11(%arg0: i32) -> (i32, i32) {
    %c0_i32 = arith.constant 0 : i32
    %c0_i32_0 = arith.constant 0 : i32
    %c0_i32_1 = arith.constant 0 : i32
    return %c0_i32, %c0_i32_0 : i32, i32
  }
  func.func @transform_12(%arg0: i32) -> (i32, i32) {
    %c0_i32 = arith.constant 0 : i32
    %c0_i32_0 = arith.constant 0 : i32
    %c0_i32_1 = arith.constant 0 : i32
    return %c0_i32, %c0_i32_0 : i32, i32
  }
  func.func @transform_13(%arg0: i32) -> (i32, i32) {
    %c0_i32 = arith.constant 0 : i32
    %c0_i32_0 = arith.constant 0 : i32
    %c0_i32_1 = arith.constant 0 : i32
    return %c0_i32, %c0_i32_0 : i32, i32
  }
  func.func @transform_14(%arg0: i32) -> (i32, i32) {
    %c0_i32 = arith.constant 0 : i32
    %c0_i32_0 = arith.constant 0 : i32
    %c0_i32_1 = arith.constant 0 : i32
    return %c0_i32, %c0_i32_0 : i32, i32
  }
  func.func @transform_15(%arg0: i32) -> (i32, i32) {
    %c0_i32 = arith.constant 0 : i32
    %c0_i32_0 = arith.constant 0 : i32
    %c0_i32_1 = arith.constant 0 : i32
    return %c0_i32, %c0_i32_0 : i32, i32
  }
  func.func @transform_16(%arg0: i32) -> (i32, i32) {
    %c0_i32 = arith.constant 0 : i32
    %c0_i32_0 = arith.constant 0 : i32
    %c0_i32_1 = arith.constant 0 : i32
    return %c0_i32, %c0_i32_0 : i32, i32
  }
  func.func @transform_17(%arg0: i32) -> (i32, i32) {
    %c0_i32 = arith.constant 0 : i32
    %c0_i32_0 = arith.constant 0 : i32
    %c0_i32_1 = arith.constant 0 : i32
    return %c0_i32, %c0_i32_0 : i32, i32
  }
  func.func @transform_18(%arg0: i32) -> (i32, i32) {
    %c0_i32 = arith.constant 0 : i32
    %c0_i32_0 = arith.constant 0 : i32
    %c0_i32_1 = arith.constant 0 : i32
    return %c0_i32, %c0_i32_0 : i32, i32
  }
  func.func @transform_19(%arg0: i32) -> (i32, i32) {
    %c0_i32 = arith.constant 0 : i32
    %c0_i32_0 = arith.constant 0 : i32
    %c0_i32_1 = arith.constant 0 : i32
    return %c0_i32, %c0_i32_0 : i32, i32
  }
  func.func @transform_20(%arg0: i32) -> (i32, i32) {
    %c0_i32 = arith.constant 0 : i32
    %c0_i32_0 = arith.constant 0 : i32
    %c0_i32_1 = arith.constant 0 : i32
    return %c0_i32, %c0_i32_0 : i32, i32
  }
  func.func @transform_21(%arg0: i32) -> (i32, i32) {
    %c0_i32 = arith.constant 0 : i32
    %c0_i32_0 = arith.constant 0 : i32
    %c0_i32_1 = arith.constant 0 : i32
    return %c0_i32, %c0_i32_0 : i32, i32
  }
  func.func @transform_22(%arg0: i32) -> (i32, i32) {
    %c0_i32 = arith.constant 0 : i32
    %c0_i32_0 = arith.constant 0 : i32
    %c0_i32_1 = arith.constant 0 : i32
    return %c0_i32, %c0_i32_0 : i32, i32
  }
  func.func @transform_23(%arg0: i32) -> (i32, i32, i32) {
    %c0_i32 = arith.constant 0 : i32
    %c0_i32_0 = arith.constant 0 : i32
    %c0_i32_1 = arith.constant 0 : i32
    return %arg0, %c0_i32, %c0_i32_0 : i32, i32, i32
  }
}

</mosaic_0001>

<llo_original>
// kernel: tpu_custom_call.1
$region0: #{tpu_custom_call.1}
  #allocation0 [shape = 'u32[]', space=smem, size = 0x4, offset = 0x4, fixed_abs, tag = 'smem constant byte address 0x4 - core index']
  #allocation1 [shape = 'u32[144,128]{1,0:T(1,128)}', space=vmem, size = 0x12000, scoped, tag = 'internal scratch']
  %s0 = inlined_call_operand.vmem [shape: bf16[1,64,32], index: 0, kind: input, shape index: {}]
  %s1 = inlined_call_operand.vmem [shape: bf16[1,128,16], index: 1, kind: input, shape index: {}]
  %s2 = inlined_call_operand.vmem [shape: bf16[16,64], index: 2, kind: input, shape index: {}]
  %s3 = inlined_call_operand.vmem [shape: s32[128,1], index: 3, kind: input, shape index: {}]
  %s4 = inlined_call_operand.vmem [shape: s32[1,64], index: 4, kind: input, shape index: {}]
  %s5 = inlined_call_operand.vmem [shape: bf16[128,32], index: 5, kind: input, shape index: {}]
  %s6 = inlined_call_operand.vmem [shape: f32[16,32], index: 6, kind: input, shape index: {}]
  %s7 = inlined_call_operand.vmem [shape: bf16[32,32], index: 7, kind: input, shape index: {}]
  %s8 = inlined_call_operand.vmem [shape: bf16[32,32], index: 8, kind: input, shape index: {}]
  %s9 = inlined_call_operand.vmem [shape: bf16[32,32], index: 9, kind: input, shape index: {}]
  %s10 = inlined_call_operand.vmem [shape: bf16[32,128], index: 10, kind: input, shape index: {}]
  %s11 = inlined_call_operand.vmem [shape: f32[1,128], index: 11, kind: input, shape index: {}]
  %s12 = inlined_call_operand.vmem [shape: bf16[128,32], index: 12, kind: input, shape index: {}]
  %s13 = inlined_call_operand.vmem [shape: f32[1,32], index: 13, kind: input, shape index: {}]
  %s14 = inlined_call_operand.vmem [shape: bf16[32,128], index: 14, kind: input, shape index: {}]
  %s15 = inlined_call_operand.vmem [shape: f32[1,128], index: 15, kind: input, shape index: {}]
  %s16 = inlined_call_operand.vmem [shape: bf16[128,32], index: 16, kind: input, shape index: {}]
  %s17 = inlined_call_operand.vmem [shape: f32[1,32], index: 17, kind: input, shape index: {}]
  %s18 = inlined_call_operand.vmem [shape: f32[1,32], index: 18, kind: input, shape index: {}]
  %s19 = inlined_call_operand.vmem [shape: f32[1,32], index: 19, kind: input, shape index: {}]
  %s20 = inlined_call_operand.vmem [shape: f32[1,32], index: 20, kind: input, shape index: {}]
  %s21 = inlined_call_operand.vmem [shape: f32[1,32], index: 21, kind: input, shape index: {}]
  %s22 = inlined_call_operand.vmem [shape: bf16[32,128], index: 22, kind: input, shape index: {}]
  %s23 = inlined_call_operand.hbm [shape: bf16[1,16,128], index: 23, kind: output, shape index: {}]
  %s24 = sld [smem:[#allocation0]]
  $region102: #{tpu_custom_call.1} parent=0
    _
  %s26 = ssub.s32 1, %s24
  %s27 = scalar_select 0, %s26, %s24
  $region1: #{tpu_custom_call.1} parent=0
    #allocation2 [shape = 'u8[4096]{0}', space=vmem, size = 0x1000, scoped, tag = 'output window, operand 0, single buffered']
    #allocation3 [shape = 's32[1]{0}', space=sflag, size = 0x4, scoped, tag = 'scoped memory for tpu_custom_call.1']
    %28 = vsyncpa [#allocation3], 0
    // Predicated region
    $region2: #{tpu_custom_call.1} parent=1 // pred_check
      _
    $region3: #{tpu_custom_call.1} parent=1 // pred_check_branch
      %30 = sbr.rel (0) target = $region5
    $region4: #{tpu_custom_call.1} parent=1 // pred_region
      _
    $region5: #{tpu_custom_call.1} parent=1 // pred_fallthru
      _
    // Predicated region
    $region6: #{tpu_custom_call.1} parent=1 // pred_check
      _
    $region7: #{tpu_custom_call.1} parent=1 // pred_check_branch
      %32 = sbr.rel (0) target = $region9
    $region8: #{tpu_custom_call.1} parent=1 // pred_region
      _
    $region9: #{tpu_custom_call.1} parent=1 // pred_fallthru
      _
    // Predicated region
    $region10: #{tpu_custom_call.1} parent=1 // pred_check
      _
    $region11: #{tpu_custom_call.1} parent=1 // pred_check_branch
      %34 = sbr.rel (0) target = $region13
    $region12: #{tpu_custom_call.1} parent=1 // pred_region
      _
    $region13: #{tpu_custom_call.1} parent=1 // pred_fallthru
      _
    // Predicated region
    $region14: #{tpu_custom_call.1} parent=1 // pred_check
      _
    $region15: #{tpu_custom_call.1} parent=1 // pred_check_branch
      %36 = sbr.rel (0) target = $region17
    $region16: #{tpu_custom_call.1} parent=1 // pred_region
      _
    $region17: #{tpu_custom_call.1} parent=1 // pred_fallthru
      _
    // Predicated region
    $region18: #{tpu_custom_call.1} parent=1 // pred_check
      _
    $region19: #{tpu_custom_call.1} parent=1 // pred_check_branch
      %38 = sbr.rel (0) target = $region21
    $region20: #{tpu_custom_call.1} parent=1 // pred_region
      _
    $region21: #{tpu_custom_call.1} parent=1 // pred_fallthru
      _
    // Predicated region
    $region22: #{tpu_custom_call.1} parent=1 // pred_check
      _
    $region23: #{tpu_custom_call.1} parent=1 // pred_check_branch
      %40 = sbr.rel (0) target = $region25
    $region24: #{tpu_custom_call.1} parent=1 // pred_region
      _
    $region25: #{tpu_custom_call.1} parent=1 // pred_fallthru
      _
    // Predicated region
    $region26: #{tpu_custom_call.1} parent=1 // pred_check
      _
    $region27: #{tpu_custom_call.1} parent=1 // pred_check_branch
      %42 = sbr.rel (0) target = $region29
    $region28: #{tpu_custom_call.1} parent=1 // pred_region
      _
    $region29: #{tpu_custom_call.1} parent=1 // pred_fallthru
      _
    // Predicated region
    $region30: #{tpu_custom_call.1} parent=1 // pred_check
      _
    $region31: #{tpu_custom_call.1} parent=1 // pred_check_branch
      %44 = sbr.rel (0) target = $region33
    $region32: #{tpu_custom_call.1} parent=1 // pred_region
      _
    $region33: #{tpu_custom_call.1} parent=1 // pred_fallthru
      _
    // Predicated region
    $region34: #{tpu_custom_call.1} parent=1 // pred_check
      _
    $region35: #{tpu_custom_call.1} parent=1 // pred_check_branch
      %46 = sbr.rel (0) target = $region37
    $region36: #{tpu_custom_call.1} parent=1 // pred_region
      _
    $region37: #{tpu_custom_call.1} parent=1 // pred_fallthru
      _
    // Predicated region
    $region38: #{tpu_custom_call.1} parent=1 // pred_check
      _
    $region39: #{tpu_custom_call.1} parent=1 // pred_check_branch
      %48 = sbr.rel (0) target = $region41
    $region40: #{tpu_custom_call.1} parent=1 // pred_region
      _
    $region41: #{tpu_custom_call.1} parent=1 // pred_fallthru
      _
    // Predicated region
    $region42: #{tpu_custom_call.1} parent=1 // pred_check
      _
    $region43: #{tpu_custom_call.1} parent=1 // pred_check_branch
      %50 = sbr.rel (0) target = $region45
    $region44: #{tpu_custom_call.1} parent=1 // pred_region
      _
    $region45: #{tpu_custom_call.1} parent=1 // pred_fallthru
      _
    // Predicated region
    $region46: #{tpu_custom_call.1} parent=1 // pred_check
      _
    $region47: #{tpu_custom_call.1} parent=1 // pred_check_branch
      %52 = sbr.rel (0) target = $region49
    $region48: #{tpu_custom_call.1} parent=1 // pred_region
      _
    $region49: #{tpu_custom_call.1} parent=1 // pred_fallthru
      _
    // Predicated region
    $region50: #{tpu_custom_call.1} parent=1 // pred_check
      _
    $region51: #{tpu_custom_call.1} parent=1 // pred_check_branch
      %54 = sbr.rel (0) target = $region53
    $region52: #{tpu_custom_call.1} parent=1 // pred_region
      _
    $region53: #{tpu_custom_call.1} parent=1 // pred_fallthru
      _
    // Predicated region
    $region54: #{tpu_custom_call.1} parent=1 // pred_check
      _
    $region55: #{tpu_custom_call.1} parent=1 // pred_check_branch
      %56 = sbr.rel (0) target = $region57
    $region56: #{tpu_custom_call.1} parent=1 // pred_region
      _
    $region57: #{tpu_custom_call.1} parent=1 // pred_fallthru
      _
    // Predicated region
    $region58: #{tpu_custom_call.1} parent=1 // pred_check
      _
    $region59: #{tpu_custom_call.1} parent=1 // pred_check_branch
      %58 = sbr.rel (0) target = $region61
    $region60: #{tpu_custom_call.1} parent=1 // pred_region
      _
    $region61: #{tpu_custom_call.1} parent=1 // pred_fallthru
      _
    // Predicated region
    $region62: #{tpu_custom_call.1} parent=1 // pred_check
      _
    $region63: #{tpu_custom_call.1} parent=1 // pred_check_branch
      %60 = sbr.rel (0) target = $region65
    $region64: #{tpu_custom_call.1} parent=1 // pred_region
      _
    $region65: #{tpu_custom_call.1} parent=1 // pred_fallthru
      _
    // Predicated region
    $region66: #{tpu_custom_call.1} parent=1 // pred_check
      _
    $region67: #{tpu_custom_call.1} parent=1 // pred_check_branch
      %62 = sbr.rel (0) target = $region69
    $region68: #{tpu_custom_call.1} parent=1 // pred_region
      _
    $region69: #{tpu_custom_call.1} parent=1 // pred_fallthru
      _
    // Predicated region
    $region70: #{tpu_custom_call.1} parent=1 // pred_check
      _
    $region71: #{tpu_custom_call.1} parent=1 // pred_check_branch
      %64 = sbr.rel (0) target = $region73
    $region72: #{tpu_custom_call.1} parent=1 // pred_region
      _
    $region73: #{tpu_custom_call.1} parent=1 // pred_fallthru
      _
    // Predicated region
    $region74: #{tpu_custom_call.1} parent=1 // pred_check
      _
    $region75: #{tpu_custom_call.1} parent=1 // pred_check_branch
      %66 = sbr.rel (0) target = $region77
    $region76: #{tpu_custom_call.1} parent=1 // pred_region
      _
    $region77: #{tpu_custom_call.1} parent=1 // pred_fallthru
      _
    // Predicated region
    $region78: #{tpu_custom_call.1} parent=1 // pred_check
      _
    $region79: #{tpu_custom_call.1} parent=1 // pred_check_branch
      %68 = sbr.rel (0) target = $region81
    $region80: #{tpu_custom_call.1} parent=1 // pred_region
      _
    $region81: #{tpu_custom_call.1} parent=1 // pred_fallthru
      _
    // Predicated region
    $region82: #{tpu_custom_call.1} parent=1 // pred_check
      _
    $region83: #{tpu_custom_call.1} parent=1 // pred_check_branch
      %70 = sbr.rel (0) target = $region85
    $region84: #{tpu_custom_call.1} parent=1 // pred_region
      _
    $region85: #{tpu_custom_call.1} parent=1 // pred_fallthru
      _
    // Predicated region
    $region86: #{tpu_custom_call.1} parent=1 // pred_check
      _
    $region87: #{tpu_custom_call.1} parent=1 // pred_check_branch
      %72 = sbr.rel (0) target = $region89
    $region88: #{tpu_custom_call.1} parent=1 // pred_region
      _
    $region89: #{tpu_custom_call.1} parent=1 // pred_fallthru
      _
    // Predicated region
    $region90: #{tpu_custom_call.1} parent=1 // pred_check
      _
    $region91: #{tpu_custom_call.1} parent=1 // pred_check_branch
      %74 = sbr.rel (0) target = $region93
    $region92: #{tpu_custom_call.1} parent=1 // pred_region
      _
    $region93: #{tpu_custom_call.1} parent=1 // pred_fallthru
      _
    %v76 = vld [vmem:[%s0] sm:$0xf]
    %v77 = vld [vmem:[%s0 + $0x4] sm:$0xf]
    %v78 = vld [vmem:[%s0 + $0x8] sm:$0xf]
    %v79 = vld [vmem:[%s0 + $0xc] sm:$0xf]
    %v80 = vld [vmem:[%s0 + $0x10] sm:$0xf]
    %v81 = vld [vmem:[%s0 + $0x14] sm:$0xf]
    %v82 = vld [vmem:[%s0 + $0x18] sm:$0xf]
    %v83 = vld [vmem:[%s0 + $0x1c] sm:$0xf]
    %v84 = vld [vmem:[%s6] sm:$0xff]
    %v85 = vld [vmem:[%s6 + $0x8] sm:$0xff]
    %v86 = vld [vmem:[%s10] sm:$0xf]
    %v87 = vld [vmem:[%s10 + $0x4] sm:$0xf]
    %v88 = vld [vmem:[%s10 + $0x8] sm:$0xf]
    %v89 = vld [vmem:[%s10 + $0xc] sm:$0xf]
    %v90 = vld [vmem:[%s11] sm:$0x1]
    %v91 = vld [vmem:[%s12] sm:$0xf]
    %v92 = vld [vmem:[%s12 + $0x4] sm:$0xf]
    %v93 = vld [vmem:[%s12 + $0x8] sm:$0xf]
    %v94 = vld [vmem:[%s12 + $0xc] sm:$0xf]
    %v95 = vld [vmem:[%s12 + $0x10] sm:$0xf]
    %v96 = vld [vmem:[%s12 + $0x14] sm:$0xf]
    %v97 = vld [vmem:[%s12 + $0x18] sm:$0xf]
    %v98 = vld [vmem:[%s12 + $0x1c] sm:$0xf]
    %v99 = vld [vmem:[%s12 + $0x20] sm:$0xf]
    %v100 = vld [vmem:[%s12 + $0x24] sm:$0xf]
    %v101 = vld [vmem:[%s12 + $0x28] sm:$0xf]
    %v102 = vld [vmem:[%s12 + $0x2c] sm:$0xf]
    %v103 = vld [vmem:[%s12 + $0x30] sm:$0xf]
    %v104 = vld [vmem:[%s12 + $0x34] sm:$0xf]
    %v105 = vld [vmem:[%s12 + $0x38] sm:$0xf]
    %v106 = vld [vmem:[%s12 + $0x3c] sm:$0xf]
    %v107 = vld [vmem:[%s13] sm:$0x1]
    %v109 = vlaneseq
    %v110 = vshrl.u32 %v109, 7
    %v111 = vsub.s32 0, %v110
    %v112 = vrot.slane %v90, %v111
    %v122 = vunpack.c.l.b16 %v76
    %v123 = vunpack.c.l.b16 %v77
    %v124 = vunpack.c.l.b16 %v78
    %v125 = vunpack.c.l.b16 %v79
    %v126 = vunpack.c.l.b16 %v80
    %v127 = vunpack.c.l.b16 %v81
    %v128 = vunpack.c.l.b16 %v82
    %v129 = vunpack.c.l.b16 %v83
    %v130 = vpack.c.b16 %v123, %v122
    %v131 = vpack.c.b16 %v125, %v124
    %v132 = vpack.c.b16 %v127, %v126
    %v133 = vpack.c.b16 %v129, %v128
    %v138 = vunpack.c.l.b16 %v86
    %v139 = vunpack.c.l.b16 %v87
    %v140 = vunpack.c.l.b16 %v88
    %v141 = vunpack.c.l.b16 %v89
    %v142 = vpack.c.b16 %v139, %v138
    %v143 = vpack.c.b16 %v141, %v140
    %vm146 = vcmask 261120
    %v148 = vsel %vm146, %v130, 0
    %v151 = vsel %vm146, %v131, 0
    %v154 = vsel %vm146, %v132, 0
    %v157 = vsel %vm146, %v133, 0
    %159 = vmatprep.subr.bf16.mxu0 0
    %160 = vmatpush1.bf16.msra.mxu0 0
    %161 = vmatprep.subr.bf16.mxu0 0
    %162 = vmatpush1.bf16.msra.mxu0 0
    %163 = vmatprep.subr.bf16.mxu0 0
    %164 = vmatpush1.bf16.msra.mxu0 0
    %165 = vmatprep.subr.bf16.mxu0 0
    %166 = vmatpush1.bf16.msra.mxu0 0
    %167 = vmatprep.subr.bf16.mxu0 0
    %168 = vmatpush1.bf16.msra.mxu0 0
    %169 = vmatprep.subr.bf16.mxu0 0
    %170 = vmatpush1.bf16.msra.mxu0 0
    %171 = vmatprep.subr.bf16.mxu0 0
    %172 = vmatpush1.bf16.msra.mxu0 %v143
    %173 = vmatprep.subr.bf16.mxu0 0
    %174 = vmatpush1.bf16.msra.mxu0 %v142
    %175 = vmatprep.subr.bf16.mxu0 0
    %176 = vmatpush2.bf16.msra.mxu0 0
    %177 = vmatprep.subr.bf16.mxu0 0
    %178 = vmatpush2.bf16.msra.mxu0 0
    %179 = vmatprep.subr.bf16.mxu0 0
    %180 = vmatpush2.bf16.msra.mxu0 0
    %181 = vmatprep.subr.bf16.mxu0 0
    %182 = vmatpush2.bf16.msra.mxu0 0
    %183 = vmatprep.subr.bf16.mxu0 0
    %184 = vmatpush2.bf16.msra.mxu0 0
    %185 = vmatprep.subr.bf16.mxu0 0
    %186 = vmatpush2.bf16.msra.mxu0 0
    %187 = vmatprep.subr.bf16.mxu0 0
    %188 = vmatpush2.bf16.msra.mxu0 0
    %189 = vmatprep.subr.bf16.mxu0 0
    %190 = vmatpush2.bf16.msra.mxu0 0
    %191 = vmatprep.mubr.bf16.mxu0 0
    %192 = vmatmul.mubr.bf16.gmra.mxu0 %v148
    %v193 = vpop.f32.mrf.mxu0
    %v194 = vadd.f32 %v112, %v193
    %v195 = vpop.f32.mrf.mxu0
    %v196 = vpop.f32.mrf.mxu0
    %v197 = vadd.f32 %v112, %v196
    %v198 = vpop.f32.mrf.mxu0
    %199 = vmatprep.mubr.bf16.mxu0 0
    %200 = vmatmul.mubr.bf16.gmra.mxu0 %v151
    %v201 = vpop.f32.mrf.mxu0
    %v202 = vadd.f32 %v112, %v201
    %v203 = vpop.f32.mrf.mxu0
    %v204 = vpop.f32.mrf.mxu0
    %v205 = vadd.f32 %v112, %v204
    %v206 = vpop.f32.mrf.mxu0
    %207 = vmatprep.mubr.bf16.mxu0 0
    %208 = vmatmul.mubr.bf16.gmra.mxu0 %v154
    %v209 = vpop.f32.mrf.mxu0
    %v210 = vadd.f32 %v112, %v209
    %v211 = vpop.f32.mrf.mxu0
    %v212 = vpop.f32.mrf.mxu0
    %v213 = vadd.f32 %v112, %v212
    %v214 = vpop.f32.mrf.mxu0
    %215 = vmatprep.mubr.bf16.mxu0 0
    %216 = vmatmul.mubr.bf16.gmra.mxu0 %v157
    %v217 = vpop.f32.mrf.mxu0
    %v218 = vadd.f32 %v112, %v217
    %v219 = vpop.f32.mrf.mxu0
    %v220 = vpop.f32.mrf.mxu0
    %v221 = vadd.f32 %v112, %v220
    %v222 = vpop.f32.mrf.mxu0
    %223 = vdwg.mxu0
    %v224 = vmul.f32 %v194, 0.2
    %v225 = vmul.f32 %v197, 0.2
    %v226 = vmul.f32 %v202, 0.2
    %v227 = vmul.f32 %v205, 0.2
    %v228 = vmul.f32 %v210, 0.2
    %v229 = vmul.f32 %v213, 0.2
    %v230 = vmul.f32 %v218, 0.2
    %v231 = vmul.f32 %v221, 0.2
    %v232 = vmax.f32 %v194, %v224
    %v233 = vmax.f32 %v197, %v225
    %v234 = vmax.f32 %v202, %v226
    %v235 = vmax.f32 %v205, %v227
    %v236 = vmax.f32 %v210, %v228
    %v237 = vmax.f32 %v213, %v229
    %v238 = vmax.f32 %v218, %v230
    %v239 = vmax.f32 %v221, %v231
    %v240 = vpack.c.bf16 %v233, %v232
    %v241 = vpack.c.bf16 %v235, %v234
    %v242 = vpack.c.bf16 %v237, %v236
    %v243 = vpack.c.bf16 %v239, %v238
    %v245 = vlaneseq
    %v246 = vshrl.u32 %v245, 7
    %v247 = vsub.s32 0, %v246
    %v248 = vrot.slane %v107, %v247
    %v266 = vunpack.c.l.b16 %v91
    %v267 = vunpack.c.l.b16 %v92
    %v268 = vunpack.c.l.b16 %v93
    %v269 = vunpack.c.l.b16 %v94
    %v270 = vunpack.c.l.b16 %v95
    %v271 = vunpack.c.l.b16 %v96
    %v272 = vunpack.c.l.b16 %v97
    %v273 = vunpack.c.l.b16 %v98
    %v274 = vunpack.c.l.b16 %v99
    %v275 = vunpack.c.l.b16 %v100
    %v276 = vunpack.c.l.b16 %v101
    %v277 = vunpack.c.l.b16 %v102
    %v278 = vunpack.c.l.b16 %v103
    %v279 = vunpack.c.l.b16 %v104
    %v280 = vunpack.c.l.b16 %v105
    %v281 = vunpack.c.l.b16 %v106
    %v282 = vpack.c.b16 %v267, %v266
    %v283 = vpack.c.b16 %v269, %v268
    %v284 = vpack.c.b16 %v271, %v270
    %v285 = vpack.c.b16 %v273, %v272
    %v286 = vpack.c.b16 %v275, %v274
    %v287 = vpack.c.b16 %v277, %v276
    %v288 = vpack.c.b16 %v279, %v278
    %v289 = vpack.c.b16 %v281, %v280
    %298 = vmatprep.subr.bf16.mxu0 0
    %299 = vmatpush1.bf16.msra.mxu0 %v289
    %300 = vmatprep.subr.bf16.mxu0 0
    %301 = vmatpush1.bf16.msra.mxu0 %v288
    %302 = vmatprep.subr.bf16.mxu0 0
    %303 = vmatpush1.bf16.msra.mxu0 %v287
    %304 = vmatprep.subr.bf16.mxu0 0
    %305 = vmatpush1.bf16.msra.mxu0 %v286
    %306 = vmatprep.subr.bf16.mxu0 0
    %307 = vmatpush1.bf16.msra.mxu0 %v285
    %308 = vmatprep.subr.bf16.mxu0 0
    %309 = vmatpush1.bf16.msra.mxu0 %v284
    %310 = vmatprep.subr.bf16.mxu0 0
    %311 = vmatpush1.bf16.msra.mxu0 %v283
    %312 = vmatprep.subr.bf16.mxu0 0
    %313 = vmatpush1.bf16.msra.mxu0 %v282
    %314 = vmatprep.subr.bf16.mxu0 0
    %315 = vmatpush2.bf16.msra.mxu0 0
    %316 = vmatprep.subr.bf16.mxu0 0
    %317 = vmatpush2.bf16.msra.mxu0 0
    %318 = vmatprep.subr.bf16.mxu0 0
    %319 = vmatpush2.bf16.msra.mxu0 0
    %320 = vmatprep.subr.bf16.mxu0 0
    %321 = vmatpush2.bf16.msra.mxu0 0
    %322 = vmatprep.subr.bf16.mxu0 0
    %323 = vmatpush2.bf16.msra.mxu0 0
    %324 = vmatprep.subr.bf16.mxu0 0
    %325 = vmatpush2.bf16.msra.mxu0 0
    %326 = vmatprep.subr.bf16.mxu0 0
    %327 = vmatpush2.bf16.msra.mxu0 0
    %328 = vmatprep.subr.bf16.mxu0 0
    %329 = vmatpush2.bf16.msra.mxu0 0
    %330 = vmatprep.mubr.bf16.mxu0 0
    %331 = vmatmul.mubr.bf16.gmra.mxu0 %v240
    %v332 = vpop.f32.mrf.mxu0
    %v333 = vadd.f32 %v248, %v332
    %v334 = vpop.f32.mrf.mxu0
    %v335 = vpop.f32.mrf.mxu0
    %v336 = vadd.f32 %v248, %v335
    %v337 = vpop.f32.mrf.mxu0
    %338 = vmatprep.mubr.bf16.mxu0 0
    %339 = vmatmul.mubr.bf16.gmra.mxu0 %v241
    %v340 = vpop.f32.mrf.mxu0
    %v341 = vadd.f32 %v248, %v340
    %v342 = vpop.f32.mrf.mxu0
    %v343 = vpop.f32.mrf.mxu0
    %v344 = vadd.f32 %v248, %v343
    %v345 = vpop.f32.mrf.mxu0
    %346 = vmatprep.mubr.bf16.mxu0 0
    %347 = vmatmul.mubr.bf16.gmra.mxu0 %v242
    %v348 = vpop.f32.mrf.mxu0
    %v349 = vadd.f32 %v248, %v348
    %v350 = vpop.f32.mrf.mxu0
    %v351 = vpop.f32.mrf.mxu0
    %v352 = vadd.f32 %v248, %v351
    %v353 = vpop.f32.mrf.mxu0
    %354 = vmatprep.mubr.bf16.mxu0 0
    %355 = vmatmul.mubr.bf16.gmra.mxu0 %v243
    %v356 = vpop.f32.mrf.mxu0
    %v357 = vadd.f32 %v248, %v356
    %v358 = vpop.f32.mrf.mxu0
    %v359 = vpop.f32.mrf.mxu0
    %v360 = vadd.f32 %v248, %v359
    %v361 = vpop.f32.mrf.mxu0
    %362 = vdwg.mxu0
    %v363 = vpack.c.bf16 %v336, %v333
    %v364 = vpack.c.bf16 %v344, %v341
    %v365 = vpack.c.bf16 %v352, %v349
    %v366 = vpack.c.bf16 %v360, %v357
    %v367 = vld [vmem:[%s7] sm:$0xf]
    %v368 = vld [vmem:[%s7 + $0x4] sm:$0xf]
    %v369 = vld [vmem:[%s7 + $0x8] sm:$0xf]
    %v370 = vld [vmem:[%s7 + $0xc] sm:$0xf]
    %v375 = vunpack.c.l.b16 %v367
    %v376 = vunpack.c.l.b16 %v368
    %v377 = vunpack.c.l.b16 %v369
    %v378 = vunpack.c.l.b16 %v370
    %v379 = vpack.c.b16 %v376, %v375
    %v380 = vpack.c.b16 %v378, %v377
    %v384 = vsel %vm146, %v363, 0
    %v387 = vsel %vm146, %v364, 0
    %v390 = vsel %vm146, %v365, 0
    %v393 = vsel %vm146, %v366, 0
    %395 = vmatprep.subr.bf16.mxu0 0
    %396 = vmatpush1.bf16.msra.mxu0 0
    %397 = vmatprep.subr.bf16.mxu0 0
    %398 = vmatpush1.bf16.msra.mxu0 0
    %399 = vmatprep.subr.bf16.mxu0 0
    %400 = vmatpush1.bf16.msra.mxu0 0
    %401 = vmatprep.subr.bf16.mxu0 0
    %402 = vmatpush1.bf16.msra.mxu0 0
    %403 = vmatprep.subr.bf16.mxu0 0
    %404 = vmatpush1.bf16.msra.mxu0 0
    %405 = vmatprep.subr.bf16.mxu0 0
    %406 = vmatpush1.bf16.msra.mxu0 0
    %407 = vmatprep.subr.bf16.mxu0 0
    %408 = vmatpush1.bf16.msra.mxu0 %v380
    %409 = vmatprep.subr.bf16.mxu0 0
    %410 = vmatpush1.bf16.msra.mxu0 %v379
    %411 = vmatprep.subr.bf16.mxu0 0
    %412 = vmatpush2.bf16.msra.mxu0 0
    %413 = vmatprep.subr.bf16.mxu0 0
    %414 = vmatpush2.bf16.msra.mxu0 0
    %415 = vmatprep.subr.bf16.mxu0 0
    %416 = vmatpush2.bf16.msra.mxu0 0
    %417 = vmatprep.subr.bf16.mxu0 0
    %418 = vmatpush2.bf16.msra.mxu0 0
    %419 = vmatprep.subr.bf16.mxu0 0
    %420 = vmatpush2.bf16.msra.mxu0 0
    %421 = vmatprep.subr.bf16.mxu0 0
    %422 = vmatpush2.bf16.msra.mxu0 0
    %423 = vmatprep.subr.bf16.mxu0 0
    %424 = vmatpush2.bf16.msra.mxu0 0
    %425 = vmatprep.subr.bf16.mxu0 0
    %426 = vmatpush2.bf16.msra.mxu0 0
    %427 = vmatprep.mubr.bf16.mxu0 0
    %428 = vmatmul.mubr.bf16.gmra.mxu0 %v384
    %v429 = vpop.f32.mrf.mxu0
    %v430 = vadd.f32 0.0, %v429
    %v431 = vpop.f32.mrf.mxu0
    %v432 = vpop.f32.mrf.mxu0
    %v433 = vadd.f32 0.0, %v432
    %v434 = vpop.f32.mrf.mxu0
    %435 = vmatprep.mubr.bf16.mxu0 0
    %436 = vmatmul.mubr.bf16.gmra.mxu0 %v387
    %v437 = vpop.f32.mrf.mxu0
    %v438 = vadd.f32 0.0, %v437
    %v439 = vpop.f32.mrf.mxu0
    %v440 = vpop.f32.mrf.mxu0
    %v441 = vadd.f32 0.0, %v440
    %v442 = vpop.f32.mrf.mxu0
    %443 = vmatprep.mubr.bf16.mxu0 0
    %444 = vmatmul.mubr.bf16.gmra.mxu0 %v390
    %v445 = vpop.f32.mrf.mxu0
    %v446 = vadd.f32 0.0, %v445
    %v447 = vpop.f32.mrf.mxu0
    %v448 = vpop.f32.mrf.mxu0
    %v449 = vadd.f32 0.0, %v448
    %v450 = vpop.f32.mrf.mxu0
    %451 = vmatprep.mubr.bf16.mxu0 0
    %452 = vmatmul.mubr.bf16.gmra.mxu0 %v393
    %v453 = vpop.f32.mrf.mxu0
    %v454 = vadd.f32 0.0, %v453
    %v455 = vpop.f32.mrf.mxu0
    %v456 = vpop.f32.mrf.mxu0
    %v457 = vadd.f32 0.0, %v456
    %v458 = vpop.f32.mrf.mxu0
    %459 = vdwg.mxu0
    %v460 = vpack.c.bf16 %v433, %v430
    %v461 = vpack.c.bf16 %v441, %v438
    %v462 = vpack.c.bf16 %v449, %v446
    %v463 = vpack.c.bf16 %v457, %v454
    %v464 = vld [vmem:[%s8] sm:$0xf]
    %v465 = vld [vmem:[%s8 + $0x4] sm:$0xf]
    %v466 = vld [vmem:[%s8 + $0x8] sm:$0xf]
    %v467 = vld [vmem:[%s8 + $0xc] sm:$0xf]
    %v472 = vunpack.c.l.b16 %v464
    %v473 = vunpack.c.l.b16 %v465
    %v474 = vunpack.c.l.b16 %v466
    %v475 = vunpack.c.l.b16 %v467
    %v476 = vpack.c.b16 %v473, %v472
    %v477 = vpack.c.b16 %v475, %v474
    %480 = vmatprep.subr.bf16.mxu0 0
    %481 = vmatpush1.bf16.msra.mxu0 0
    %482 = vmatprep.subr.bf16.mxu0 0
    %483 = vmatpush1.bf16.msra.mxu0 0
    %484 = vmatprep.subr.bf16.mxu0 0
    %485 = vmatpush1.bf16.msra.mxu0 0
    %486 = vmatprep.subr.bf16.mxu0 0
    %487 = vmatpush1.bf16.msra.mxu0 0
    %488 = vmatprep.subr.bf16.mxu0 0
    %489 = vmatpush1.bf16.msra.mxu0 0
    %490 = vmatprep.subr.bf16.mxu0 0
    %491 = vmatpush1.bf16.msra.mxu0 0
    %492 = vmatprep.subr.bf16.mxu0 0
    %493 = vmatpush1.bf16.msra.mxu0 %v477
    %494 = vmatprep.subr.bf16.mxu0 0
    %495 = vmatpush1.bf16.msra.mxu0 %v476
    %496 = vmatprep.subr.bf16.mxu0 0
    %497 = vmatpush2.bf16.msra.mxu0 0
    %498 = vmatprep.subr.bf16.mxu0 0
    %499 = vmatpush2.bf16.msra.mxu0 0
    %500 = vmatprep.subr.bf16.mxu0 0
    %501 = vmatpush2.bf16.msra.mxu0 0
    %502 = vmatprep.subr.bf16.mxu0 0
    %503 = vmatpush2.bf16.msra.mxu0 0
    %504 = vmatprep.subr.bf16.mxu0 0
    %505 = vmatpush2.bf16.msra.mxu0 0
    %506 = vmatprep.subr.bf16.mxu0 0
    %507 = vmatpush2.bf16.msra.mxu0 0
    %508 = vmatprep.subr.bf16.mxu0 0
    %509 = vmatpush2.bf16.msra.mxu0 0
    %510 = vmatprep.subr.bf16.mxu0 0
    %511 = vmatpush2.bf16.msra.mxu0 0
    %512 = vmatprep.mubr.bf16.mxu0 0
    %513 = vmatmul.mubr.bf16.gmra.mxu0 %v384
    %v514 = vpop.f32.mrf.mxu0
    %v515 = vadd.f32 0.0, %v514
    %v516 = vpop.f32.mrf.mxu0
    %v517 = vpop.f32.mrf.mxu0
    %v518 = vadd.f32 0.0, %v517
    %v519 = vpop.f32.mrf.mxu0
    %520 = vmatprep.mubr.bf16.mxu0 0
    %521 = vmatmul.mubr.bf16.gmra.mxu0 %v387
    %v522 = vpop.f32.mrf.mxu0
    %v523 = vadd.f32 0.0, %v522
    %v524 = vpop.f32.mrf.mxu0
    %v525 = vpop.f32.mrf.mxu0
    %v526 = vadd.f32 0.0, %v525
    %v527 = vpop.f32.mrf.mxu0
    %528 = vmatprep.mubr.bf16.mxu0 0
    %529 = vmatmul.mubr.bf16.gmra.mxu0 %v390
    %v530 = vpop.f32.mrf.mxu0
    %v531 = vadd.f32 0.0, %v530
    %v532 = vpop.f32.mrf.mxu0
    %v533 = vpop.f32.mrf.mxu0
    %v534 = vadd.f32 0.0, %v533
    %v535 = vpop.f32.mrf.mxu0
    %536 = vmatprep.mubr.bf16.mxu0 0
    %537 = vmatmul.mubr.bf16.gmra.mxu0 %v393
    %v538 = vpop.f32.mrf.mxu0
    %v539 = vadd.f32 0.0, %v538
    %v540 = vpop.f32.mrf.mxu0
    %v541 = vpop.f32.mrf.mxu0
    %v542 = vadd.f32 0.0, %v541
    %v543 = vpop.f32.mrf.mxu0
    %544 = vdwg.mxu0
    %v545 = vpack.c.bf16 %v518, %v515
    %v546 = vpack.c.bf16 %v526, %v523
    %v547 = vpack.c.bf16 %v534, %v531
    %v548 = vpack.c.bf16 %v542, %v539
    %v549 = vld [vmem:[%s1] sm:$0xf]
    %v550 = vld [vmem:[%s1 + $0x4] sm:$0xf]
    %v551 = vld [vmem:[%s1 + $0x8] sm:$0xf]
    %v552 = vld [vmem:[%s1 + $0xc] sm:$0xf]
    %v553 = vld [vmem:[%s1 + $0x10] sm:$0xf]
    %v554 = vld [vmem:[%s1 + $0x14] sm:$0xf]
    %v555 = vld [vmem:[%s1 + $0x18] sm:$0xf]
    %v556 = vld [vmem:[%s1 + $0x1c] sm:$0xf]
    %v557 = vld [vmem:[%s1 + $0x20] sm:$0xf]
    %v558 = vld [vmem:[%s1 + $0x24] sm:$0xf]
    %v559 = vld [vmem:[%s1 + $0x28] sm:$0xf]
    %v560 = vld [vmem:[%s1 + $0x2c] sm:$0xf]
    %v561 = vld [vmem:[%s1 + $0x30] sm:$0xf]
    %v562 = vld [vmem:[%s1 + $0x34] sm:$0xf]
    %v563 = vld [vmem:[%s1 + $0x38] sm:$0xf]
    %v564 = vld [vmem:[%s1 + $0x3c] sm:$0xf]
    %v565 = vld [vmem:[%s2] sm:$0xf]
    %v566 = vld [vmem:[%s2 + $0x4] sm:$0xf]
    %v583 = vunpack.c.l.b16 %v549
    %v584 = vunpack.c.l.b16 %v550
    %v585 = vunpack.c.l.b16 %v551
    %v586 = vunpack.c.l.b16 %v552
    %v587 = vunpack.c.l.b16 %v553
    %v588 = vunpack.c.l.b16 %v554
    %v589 = vunpack.c.l.b16 %v555
    %v590 = vunpack.c.l.b16 %v556
    %v591 = vunpack.c.l.b16 %v557
    %v592 = vunpack.c.l.b16 %v558
    %v593 = vunpack.c.l.b16 %v559
    %v594 = vunpack.c.l.b16 %v560
    %v595 = vunpack.c.l.b16 %v561
    %v596 = vunpack.c.l.b16 %v562
    %v597 = vunpack.c.l.b16 %v563
    %v598 = vunpack.c.l.b16 %v564
    %v599 = vpack.c.b16 %v584, %v583
    %v600 = vpack.c.b16 %v586, %v585
    %v601 = vpack.c.b16 %v588, %v587
    %v602 = vpack.c.b16 %v590, %v589
    %v603 = vpack.c.b16 %v592, %v591
    %v604 = vpack.c.b16 %v594, %v593
    %v605 = vpack.c.b16 %v596, %v595
    %v606 = vpack.c.b16 %v598, %v597
    %v609 = vunpack.c.l.b16 %v565
    %v610 = vunpack.c.l.b16 %v566
    %v611 = vpack.c.b16 %v610, %v609
    %vm613 = vcmask 130048
    %v615 = vsel %vm613, %v599, 0
    %v618 = vsel %vm613, %v600, 0
    %v621 = vsel %vm613, %v601, 0
    %v624 = vsel %vm613, %v602, 0
    %v627 = vsel %vm613, %v603, 0
    %v630 = vsel %vm613, %v604, 0
    %v633 = vsel %vm613, %v605, 0
    %v636 = vsel %vm613, %v606, 0
    %638 = vmatprep.subr.bf16.mxu0 0
    %639 = vmatpush1.bf16.msra.mxu0 0
    %640 = vmatprep.subr.bf16.mxu0 0
    %641 = vmatpush1.bf16.msra.mxu0 0
    %642 = vmatprep.subr.bf16.mxu0 0
    %643 = vmatpush1.bf16.msra.mxu0 0
    %644 = vmatprep.subr.bf16.mxu0 0
    %645 = vmatpush1.bf16.msra.mxu0 0
    %646 = vmatprep.subr.bf16.mxu0 0
    %647 = vmatpush1.bf16.msra.mxu0 0
    %648 = vmatprep.subr.bf16.mxu0 0
    %649 = vmatpush1.bf16.msra.mxu0 0
    %650 = vmatprep.subr.bf16.mxu0 0
    %651 = vmatpush1.bf16.msra.mxu0 0
    %652 = vmatprep.subr.bf16.mxu0 0
    %653 = vmatpush1.bf16.msra.mxu0 %v611
    %654 = vmatprep.subr.bf16.mxu0 0
    %655 = vmatpush2.bf16.msra.mxu0 0
    %656 = vmatprep.subr.bf16.mxu0 0
    %657 = vmatpush2.bf16.msra.mxu0 0
    %658 = vmatprep.subr.bf16.mxu0 0
    %659 = vmatpush2.bf16.msra.mxu0 0
    %660 = vmatprep.subr.bf16.mxu0 0
    %661 = vmatpush2.bf16.msra.mxu0 0
    %662 = vmatprep.subr.bf16.mxu0 0
    %663 = vmatpush2.bf16.msra.mxu0 0
    %664 = vmatprep.subr.bf16.mxu0 0
    %665 = vmatpush2.bf16.msra.mxu0 0
    %666 = vmatprep.subr.bf16.mxu0 0
    %667 = vmatpush2.bf16.msra.mxu0 0
    %668 = vmatprep.subr.bf16.mxu0 0
    %669 = vmatpush2.bf16.msra.mxu0 0
    %670 = vmatprep.mubr.bf16.mxu0 0
    %671 = vmatmul.mubr.bf16.gmra.mxu0 %v615
    %v672 = vpop.f32.mrf.mxu0
    %v673 = vadd.f32 0.0, %v672
    %v674 = vpop.f32.mrf.mxu0
    %v675 = vpop.f32.mrf.mxu0
    %v676 = vadd.f32 0.0, %v675
    %v677 = vpop.f32.mrf.mxu0
    %678 = vmatprep.mubr.bf16.mxu0 0
    %679 = vmatmul.mubr.bf16.gmra.mxu0 %v618
    %v680 = vpop.f32.mrf.mxu0
    %v681 = vadd.f32 0.0, %v680
    %v682 = vpop.f32.mrf.mxu0
    %v683 = vpop.f32.mrf.mxu0
    %v684 = vadd.f32 0.0, %v683
    %v685 = vpop.f32.mrf.mxu0
    %686 = vmatprep.mubr.bf16.mxu0 0
    %687 = vmatmul.mubr.bf16.gmra.mxu0 %v621
    %v688 = vpop.f32.mrf.mxu0
    %v689 = vadd.f32 0.0, %v688
    %v690 = vpop.f32.mrf.mxu0
    %v691 = vpop.f32.mrf.mxu0
    %v692 = vadd.f32 0.0, %v691
    %v693 = vpop.f32.mrf.mxu0
    %694 = vmatprep.mubr.bf16.mxu0 0
    %695 = vmatmul.mubr.bf16.gmra.mxu0 %v624
    %v696 = vpop.f32.mrf.mxu0
    %v697 = vadd.f32 0.0, %v696
    %v698 = vpop.f32.mrf.mxu0
    %v699 = vpop.f32.mrf.mxu0
    %v700 = vadd.f32 0.0, %v699
    %v701 = vpop.f32.mrf.mxu0
    %702 = vmatprep.mubr.bf16.mxu0 0
    %703 = vmatmul.mubr.bf16.gmra.mxu0 %v627
    %v704 = vpop.f32.mrf.mxu0
    %v705 = vadd.f32 0.0, %v704
    %v706 = vpop.f32.mrf.mxu0
    %v707 = vpop.f32.mrf.mxu0
    %v708 = vadd.f32 0.0, %v707
    %v709 = vpop.f32.mrf.mxu0
    %710 = vmatprep.mubr.bf16.mxu0 0
    %711 = vmatmul.mubr.bf16.gmra.mxu0 %v630
    %v712 = vpop.f32.mrf.mxu0
    %v713 = vadd.f32 0.0, %v712
    %v714 = vpop.f32.mrf.mxu0
    %v715 = vpop.f32.mrf.mxu0
    %v716 = vadd.f32 0.0, %v715
    %v717 = vpop.f32.mrf.mxu0
    %718 = vmatprep.mubr.bf16.mxu0 0
    %719 = vmatmul.mubr.bf16.gmra.mxu0 %v633
    %v720 = vpop.f32.mrf.mxu0
    %v721 = vadd.f32 0.0, %v720
    %v722 = vpop.f32.mrf.mxu0
    %v723 = vpop.f32.mrf.mxu0
    %v724 = vadd.f32 0.0, %v723
    %v725 = vpop.f32.mrf.mxu0
    %726 = vmatprep.mubr.bf16.mxu0 0
    %727 = vmatmul.mubr.bf16.gmra.mxu0 %v636
    %v728 = vpop.f32.mrf.mxu0
    %v729 = vadd.f32 0.0, %v728
    %v730 = vpop.f32.mrf.mxu0
    %v731 = vpop.f32.mrf.mxu0
    %v732 = vadd.f32 0.0, %v731
    %v733 = vpop.f32.mrf.mxu0
    %734 = vdwg.mxu0
    %v735 = vld [vmem:[%s3] sm:$0xff]
    %v736 = vld [vmem:[%s3 + $0x8] sm:$0xff]
    %v737 = vld [vmem:[%s3 + $0x10] sm:$0xff]
    %v738 = vld [vmem:[%s3 + $0x18] sm:$0xff]
    %v739 = vld [vmem:[%s3 + $0x20] sm:$0xff]
    %v740 = vld [vmem:[%s3 + $0x28] sm:$0xff]
    %v741 = vld [vmem:[%s3 + $0x30] sm:$0xff]
    %v742 = vld [vmem:[%s3 + $0x38] sm:$0xff]
    %v743 = vld [vmem:[%s3 + $0x40] sm:$0xff]
    %v744 = vld [vmem:[%s3 + $0x48] sm:$0xff]
    %v745 = vld [vmem:[%s3 + $0x50] sm:$0xff]
    %v746 = vld [vmem:[%s3 + $0x58] sm:$0xff]
    %v747 = vld [vmem:[%s3 + $0x60] sm:$0xff]
    %v748 = vld [vmem:[%s3 + $0x68] sm:$0xff]
    %v749 = vld [vmem:[%s3 + $0x70] sm:$0xff]
    %v750 = vld [vmem:[%s3 + $0x78] sm:$0xff]
    %v751 = vld [vmem:[%s4] sm:$0x1]
    %752 = vset.pattern.permute.xlu0 0
    %753 = vperm.xlu0 %752, %v735
    %v754 = vpop.permute.xlu0 %753
    %755 = vset.pattern.permute.xlu0 0
    %756 = vperm.xlu0 %755, %v736
    %v757 = vpop.permute.xlu0 %756
    %758 = vset.pattern.permute.xlu0 0
    %759 = vperm.xlu0 %758, %v737
    %v760 = vpop.permute.xlu0 %759
    %761 = vset.pattern.permute.xlu0 0
    %762 = vperm.xlu0 %761, %v738
    %v763 = vpop.permute.xlu0 %762
    %764 = vset.pattern.permute.xlu0 0
    %765 = vperm.xlu0 %764, %v739
    %v766 = vpop.permute.xlu0 %765
    %767 = vset.pattern.permute.xlu0 0
    %768 = vperm.xlu0 %767, %v740
    %v769 = vpop.permute.xlu0 %768
    %770 = vset.pattern.permute.xlu0 0
    %771 = vperm.xlu0 %770, %v741
    %v772 = vpop.permute.xlu0 %771
    %773 = vset.pattern.permute.xlu0 0
    %774 = vperm.xlu0 %773, %v742
    %v775 = vpop.permute.xlu0 %774
    %776 = vset.pattern.permute.xlu0 0
    %777 = vperm.xlu0 %776, %v743
    %v778 = vpop.permute.xlu0 %777
    %779 = vset.pattern.permute.xlu0 0
    %780 = vperm.xlu0 %779, %v744
    %v781 = vpop.permute.xlu0 %780
    %782 = vset.pattern.permute.xlu0 0
    %783 = vperm.xlu0 %782, %v745
    %v784 = vpop.permute.xlu0 %783
    %785 = vset.pattern.permute.xlu0 0
    %786 = vperm.xlu0 %785, %v746
    %v787 = vpop.permute.xlu0 %786
    %788 = vset.pattern.permute.xlu0 0
    %789 = vperm.xlu0 %788, %v747
    %v790 = vpop.permute.xlu0 %789
    %791 = vset.pattern.permute.xlu0 0
    %792 = vperm.xlu0 %791, %v748
    %v793 = vpop.permute.xlu0 %792
    %794 = vset.pattern.permute.xlu0 0
    %795 = vperm.xlu0 %794, %v749
    %v796 = vpop.permute.xlu0 %795
    %797 = vset.pattern.permute.xlu0 0
    %798 = vperm.xlu0 %797, %v750
    %v799 = vpop.permute.xlu0 %798
    %v800 = vlaneseq
    %v801 = vshrl.u32 %v800, 7
    %v802 = vsub.s32 0, %v801
    %v803 = vrot.slane %v751, %v802
    %vm804 = vcmp.eq.s32.totalorder %v754, %v803
    %vm805 = vcmp.eq.s32.totalorder %v757, %v803
    %vm806 = vcmp.eq.s32.totalorder %v760, %v803
    %vm807 = vcmp.eq.s32.totalorder %v763, %v803
    %vm808 = vcmp.eq.s32.totalorder %v766, %v803
    %vm809 = vcmp.eq.s32.totalorder %v769, %v803
    %vm810 = vcmp.eq.s32.totalorder %v772, %v803
    %vm811 = vcmp.eq.s32.totalorder %v775, %v803
    %vm812 = vcmp.eq.s32.totalorder %v778, %v803
    %vm813 = vcmp.eq.s32.totalorder %v781, %v803
    %vm814 = vcmp.eq.s32.totalorder %v784, %v803
    %vm815 = vcmp.eq.s32.totalorder %v787, %v803
    %vm816 = vcmp.eq.s32.totalorder %v790, %v803
    %vm817 = vcmp.eq.s32.totalorder %v793, %v803
    %vm818 = vcmp.eq.s32.totalorder %v796, %v803
    %vm819 = vcmp.eq.s32.totalorder %v799, %v803
    %vm820 = vcmp.gt.f32.partialorder %v673, 0.5
    %vm821 = vcmp.gt.f32.partialorder %v676, 0.5
    %vm822 = vcmp.gt.f32.partialorder %v681, 0.5
    %vm823 = vcmp.gt.f32.partialorder %v684, 0.5
    %vm824 = vcmp.gt.f32.partialorder %v689, 0.5
    %vm825 = vcmp.gt.f32.partialorder %v692, 0.5
    %vm826 = vcmp.gt.f32.partialorder %v697, 0.5
    %vm827 = vcmp.gt.f32.partialorder %v700, 0.5
    %vm828 = vcmp.gt.f32.partialorder %v705, 0.5
    %vm829 = vcmp.gt.f32.partialorder %v708, 0.5
    %vm830 = vcmp.gt.f32.partialorder %v713, 0.5
    %vm831 = vcmp.gt.f32.partialorder %v716, 0.5
    %vm832 = vcmp.gt.f32.partialorder %v721, 0.5
    %vm833 = vcmp.gt.f32.partialorder %v724, 0.5
    %vm834 = vcmp.gt.f32.partialorder %v729, 0.5
    %vm835 = vcmp.gt.f32.partialorder %v732, 0.5
    %vm836 = vmand %vm804, %vm820
    %vm837 = vmand %vm805, %vm821
    %vm838 = vmand %vm806, %vm822
    %vm839 = vmand %vm807, %vm823
    %vm840 = vmand %vm808, %vm824
    %vm841 = vmand %vm809, %vm825
    %vm842 = vmand %vm810, %vm826
    %vm843 = vmand %vm811, %vm827
    %vm844 = vmand %vm812, %vm828
    %vm845 = vmand %vm813, %vm829
    %vm846 = vmand %vm814, %vm830
    %vm847 = vmand %vm815, %vm831
    %vm848 = vmand %vm816, %vm832
    %vm849 = vmand %vm817, %vm833
    %vm850 = vmand %vm818, %vm834
    %vm851 = vmand %vm819, %vm835
    %v852 = vld [vmem:[%s5] sm:$0xf]
    %v853 = vld [vmem:[%s5 + $0x4] sm:$0xf]
    %v854 = vld [vmem:[%s5 + $0x8] sm:$0xf]
    %v855 = vld [vmem:[%s5 + $0xc] sm:$0xf]
    %v856 = vld [vmem:[%s5 + $0x10] sm:$0xf]
    %v857 = vld [vmem:[%s5 + $0x14] sm:$0xf]
    %v858 = vld [vmem:[%s5 + $0x18] sm:$0xf]
    %v859 = vld [vmem:[%s5 + $0x1c] sm:$0xf]
    %v860 = vld [vmem:[%s5 + $0x20] sm:$0xf]
    %v861 = vld [vmem:[%s5 + $0x24] sm:$0xf]
    %v862 = vld [vmem:[%s5 + $0x28] sm:$0xf]
    %v863 = vld [vmem:[%s5 + $0x2c] sm:$0xf]
    %v864 = vld [vmem:[%s5 + $0x30] sm:$0xf]
    %v865 = vld [vmem:[%s5 + $0x34] sm:$0xf]
    %v866 = vld [vmem:[%s5 + $0x38] sm:$0xf]
    %v867 = vld [vmem:[%s5 + $0x3c] sm:$0xf]
    %v884 = vunpack.c.l.b16 %v852
    %v885 = vunpack.c.l.b16 %v853
    %v886 = vunpack.c.l.b16 %v854
    %v887 = vunpack.c.l.b16 %v855
    %v888 = vunpack.c.l.b16 %v856
    %v889 = vunpack.c.l.b16 %v857
    %v890 = vunpack.c.l.b16 %v858
    %v891 = vunpack.c.l.b16 %v859
    %v892 = vunpack.c.l.b16 %v860
    %v893 = vunpack.c.l.b16 %v861
    %v894 = vunpack.c.l.b16 %v862
    %v895 = vunpack.c.l.b16 %v863
    %v896 = vunpack.c.l.b16 %v864
    %v897 = vunpack.c.l.b16 %v865
    %v898 = vunpack.c.l.b16 %v866
    %v899 = vunpack.c.l.b16 %v867
    %v900 = vpack.c.b16 %v885, %v884
    %v901 = vpack.c.b16 %v887, %v886
    %v902 = vpack.c.b16 %v889, %v888
    %v903 = vpack.c.b16 %v891, %v890
    %v904 = vpack.c.b16 %v893, %v892
    %v905 = vpack.c.b16 %v895, %v894
    %v906 = vpack.c.b16 %v897, %v896
    %v907 = vpack.c.b16 %v899, %v898
    %v909 = vsel %vm146, %v900, 0
    %v912 = vsel %vm146, %v901, 0
    %v915 = vsel %vm146, %v902, 0
    %v918 = vsel %vm146, %v903, 0
    %v921 = vsel %vm146, %v904, 0
    %v924 = vsel %vm146, %v905, 0
    %v927 = vsel %vm146, %v906, 0
    %v930 = vsel %vm146, %v907, 0
    %v933 = vsel %vm146, %v460, 0
    %v936 = vsel %vm146, %v461, 0
    %v939 = vsel %vm146, %v462, 0
    %v942 = vsel %vm146, %v463, 0
    %944 = vmatprep.subr.bf16.mxu0 0
    %945 = vmatpush1.bf16.xpose.msra.mxu0 0
    %946 = vmatprep.subr.bf16.mxu0 0
    %947 = vmatpush1.bf16.xpose.msra.mxu0 0
    %948 = vmatprep.subr.bf16.mxu0 0
    %949 = vmatpush1.bf16.xpose.msra.mxu0 0
    %950 = vmatprep.subr.bf16.mxu0 0
    %951 = vmatpush1.bf16.xpose.msra.mxu0 0
    %952 = vmatprep.subr.bf16.mxu0 0
    %953 = vmatpush1.bf16.xpose.msra.mxu0 %v942
    %954 = vmatprep.subr.bf16.mxu0 0
    %955 = vmatpush1.bf16.xpose.msra.mxu0 %v939
    %956 = vmatprep.subr.bf16.mxu0 0
    %957 = vmatpush1.bf16.xpose.msra.mxu0 %v936
    %958 = vmatprep.subr.bf16.mxu0 0
    %959 = vmatpush1.bf16.xpose.msra.mxu0 %v933
    %960 = vmatprep.subr.bf16.mxu0 0
    %961 = vmatpush2.bf16.xpose.msra.mxu0 0
    %962 = vmatprep.subr.bf16.mxu0 0
    %963 = vmatpush2.bf16.xpose.msra.mxu0 0
    %964 = vmatprep.subr.bf16.mxu0 0
    %965 = vmatpush2.bf16.xpose.msra.mxu0 0
    %966 = vmatprep.subr.bf16.mxu0 0
    %967 = vmatpush2.bf16.xpose.msra.mxu0 0
    %968 = vmatprep.subr.bf16.mxu0 0
    %969 = vmatpush2.bf16.xpose.msra.mxu0 0
    %970 = vmatprep.subr.bf16.mxu0 0
    %971 = vmatpush2.bf16.xpose.msra.mxu0 0
    %972 = vmatprep.subr.bf16.mxu0 0
    %973 = vmatpush2.bf16.xpose.msra.mxu0 0
    %974 = vmatprep.subr.bf16.mxu0 0
    %975 = vmatpush2.bf16.xpose.msra.mxu0 0
    %976 = vmatprep.mubr.bf16.mxu0 0
    %977 = vmatmul.mubr.bf16.gmra.mxu0 %v909
    %v978 = vpop.f32.mrf.mxu0
    %v979 = vadd.f32 0.0, %v978
    %v980 = vpop.f32.mrf.mxu0
    %v981 = vpop.f32.mrf.mxu0
    %v982 = vadd.f32 0.0, %v981
    %v983 = vpop.f32.mrf.mxu0
    %984 = vmatprep.mubr.bf16.mxu0 0
    %985 = vmatmul.mubr.bf16.gmra.mxu0 %v912
    %v986 = vpop.f32.mrf.mxu0
    %v987 = vadd.f32 0.0, %v986
    %v988 = vpop.f32.mrf.mxu0
    %v989 = vpop.f32.mrf.mxu0
    %v990 = vadd.f32 0.0, %v989
    %v991 = vpop.f32.mrf.mxu0
    %992 = vmatprep.mubr.bf16.mxu0 0
    %993 = vmatmul.mubr.bf16.gmra.mxu0 %v915
    %v994 = vpop.f32.mrf.mxu0
    %v995 = vadd.f32 0.0, %v994
    %v996 = vpop.f32.mrf.mxu0
    %v997 = vpop.f32.mrf.mxu0
    %v998 = vadd.f32 0.0, %v997
    %v999 = vpop.f32.mrf.mxu0
    %1000 = vmatprep.mubr.bf16.mxu0 0
    %1001 = vmatmul.mubr.bf16.gmra.mxu0 %v918
    %v1002 = vpop.f32.mrf.mxu0
    %v1003 = vadd.f32 0.0, %v1002
    %v1004 = vpop.f32.mrf.mxu0
    %v1005 = vpop.f32.mrf.mxu0
    %v1006 = vadd.f32 0.0, %v1005
    %v1007 = vpop.f32.mrf.mxu0
    %1008 = vmatprep.mubr.bf16.mxu0 0
    %1009 = vmatmul.mubr.bf16.gmra.mxu0 %v921
    %v1010 = vpop.f32.mrf.mxu0
    %v1011 = vadd.f32 0.0, %v1010
    %v1012 = vpop.f32.mrf.mxu0
    %v1013 = vpop.f32.mrf.mxu0
    %v1014 = vadd.f32 0.0, %v1013
    %v1015 = vpop.f32.mrf.mxu0
    %1016 = vmatprep.mubr.bf16.mxu0 0
    %1017 = vmatmul.mubr.bf16.gmra.mxu0 %v924
    %v1018 = vpop.f32.mrf.mxu0
    %v1019 = vadd.f32 0.0, %v1018
    %v1020 = vpop.f32.mrf.mxu0
    %v1021 = vpop.f32.mrf.mxu0
    %v1022 = vadd.f32 0.0, %v1021
    %v1023 = vpop.f32.mrf.mxu0
    %1024 = vmatprep.mubr.bf16.mxu0 0
    %1025 = vmatmul.mubr.bf16.gmra.mxu0 %v927
    %v1026 = vpop.f32.mrf.mxu0
    %v1027 = vadd.f32 0.0, %v1026
    %v1028 = vpop.f32.mrf.mxu0
    %v1029 = vpop.f32.mrf.mxu0
    %v1030 = vadd.f32 0.0, %v1029
    %v1031 = vpop.f32.mrf.mxu0
    %1032 = vmatprep.mubr.bf16.mxu0 0
    %1033 = vmatmul.mubr.bf16.gmra.mxu0 %v930
    %v1034 = vpop.f32.mrf.mxu0
    %v1035 = vadd.f32 0.0, %v1034
    %v1036 = vpop.f32.mrf.mxu0
    %v1037 = vpop.f32.mrf.mxu0
    %v1038 = vadd.f32 0.0, %v1037
    %v1039 = vpop.f32.mrf.mxu0
    %1040 = vdwg.mxu0
    %v1041 = vsel %vm836, %v979, -1e+30
    %v1042 = vsel %vm837, %v982, -1e+30
    %v1043 = vsel %vm838, %v987, -1e+30
    %v1044 = vsel %vm839, %v990, -1e+30
    %v1045 = vsel %vm840, %v995, -1e+30
    %v1046 = vsel %vm841, %v998, -1e+30
    %v1047 = vsel %vm842, %v1003, -1e+30
    %v1048 = vsel %vm843, %v1006, -1e+30
    %v1049 = vsel %vm844, %v1011, -1e+30
    %v1050 = vsel %vm845, %v1014, -1e+30
    %v1051 = vsel %vm846, %v1019, -1e+30
    %v1052 = vsel %vm847, %v1022, -1e+30
    %v1053 = vsel %vm848, %v1027, -1e+30
    %v1054 = vsel %vm849, %v1030, -1e+30
    %v1055 = vsel %vm850, %v1035, -1e+30
    %v1056 = vsel %vm851, %v1038, -1e+30
    %vm1057 = vcmask 523264
    %v1058 = vsel %vm1057, %v1041, -inf
    %1059 = vmax.xlane.f32.xlu0 %v1058
    %v1060 = vpop.xlane.xlu0 %1059
    %v1061 = vsel %vm1057, %v1042, -inf
    %1062 = vmax.xlane.f32.xlu0 %v1061
    %v1063 = vpop.xlane.xlu0 %1062
    %v1064 = vsel %vm1057, %v1043, -inf
    %1065 = vmax.xlane.f32.xlu0 %v1064
    %v1066 = vpop.xlane.xlu0 %1065
    %v1067 = vsel %vm1057, %v1044, -inf
    %1068 = vmax.xlane.f32.xlu0 %v1067
    %v1069 = vpop.xlane.xlu0 %1068
    %v1070 = vsel %vm1057, %v1045, -inf
    %1071 = vmax.xlane.f32.xlu0 %v1070
    %v1072 = vpop.xlane.xlu0 %1071
    %v1073 = vsel %vm1057, %v1046, -inf
    %1074 = vmax.xlane.f32.xlu0 %v1073
    %v1075 = vpop.xlane.xlu0 %1074
    %v1076 = vsel %vm1057, %v1047, -inf
    %1077 = vmax.xlane.f32.xlu0 %v1076
    %v1078 = vpop.xlane.xlu0 %1077
    %v1079 = vsel %vm1057, %v1048, -inf
    %1080 = vmax.xlane.f32.xlu0 %v1079
    %v1081 = vpop.xlane.xlu0 %1080
    %v1082 = vsel %vm1057, %v1049, -inf
    %1083 = vmax.xlane.f32.xlu0 %v1082
    %v1084 = vpop.xlane.xlu0 %1083
    %v1085 = vsel %vm1057, %v1050, -inf
    %1086 = vmax.xlane.f32.xlu0 %v1085
    %v1087 = vpop.xlane.xlu0 %1086
    %v1088 = vsel %vm1057, %v1051, -inf
    %1089 = vmax.xlane.f32.xlu0 %v1088
    %v1090 = vpop.xlane.xlu0 %1089
    %v1091 = vsel %vm1057, %v1052, -inf
    %1092 = vmax.xlane.f32.xlu0 %v1091
    %v1093 = vpop.xlane.xlu0 %1092
    %v1094 = vsel %vm1057, %v1053, -inf
    %1095 = vmax.xlane.f32.xlu0 %v1094
    %v1096 = vpop.xlane.xlu0 %1095
    %v1097 = vsel %vm1057, %v1054, -inf
    %1098 = vmax.xlane.f32.xlu0 %v1097
    %v1099 = vpop.xlane.xlu0 %1098
    %v1100 = vsel %vm1057, %v1055, -inf
    %1101 = vmax.xlane.f32.xlu0 %v1100
    %v1102 = vpop.xlane.xlu0 %1101
    %v1103 = vsel %vm1057, %v1056, -inf
    %1104 = vmax.xlane.f32.xlu0 %v1103
    %v1105 = vpop.xlane.xlu0 %1104
    %v1106 = vsub.f32 %v1041, %v1060
    %v1107 = vsub.f32 %v1042, %v1063
    %v1108 = vsub.f32 %v1043, %v1066
    %v1109 = vsub.f32 %v1044, %v1069
    %v1110 = vsub.f32 %v1045, %v1072
    %v1111 = vsub.f32 %v1046, %v1075
    %v1112 = vsub.f32 %v1047, %v1078
    %v1113 = vsub.f32 %v1048, %v1081
    %v1114 = vsub.f32 %v1049, %v1084
    %v1115 = vsub.f32 %v1050, %v1087
    %v1116 = vsub.f32 %v1051, %v1090
    %v1117 = vsub.f32 %v1052, %v1093
    %v1118 = vsub.f32 %v1053, %v1096
    %v1119 = vsub.f32 %v1054, %v1099
    %v1120 = vsub.f32 %v1055, %v1102
    %v1121 = vsub.f32 %v1056, %v1105
    %v1122 = vmul.f32 %v1106, 1.442695
    %v1123 = vpow.pop %v1122
    %v1124 = vmul.f32 %v1107, 1.442695
    %v1125 = vpow.pop %v1124
    %v1126 = vmul.f32 %v1108, 1.442695
    %v1127 = vpow.pop %v1126
    %v1128 = vmul.f32 %v1109, 1.442695
    %v1129 = vpow.pop %v1128
    %v1130 = vmul.f32 %v1110, 1.442695
    %v1131 = vpow.pop %v1130
    %v1132 = vmul.f32 %v1111, 1.442695
    %v1133 = vpow.pop %v1132
    %v1134 = vmul.f32 %v1112, 1.442695
    %v1135 = vpow.pop %v1134
    %v1136 = vmul.f32 %v1113, 1.442695
    %v1137 = vpow.pop %v1136
    %v1138 = vmul.f32 %v1114, 1.442695
    %v1139 = vpow.pop %v1138
    %v1140 = vmul.f32 %v1115, 1.442695
    %v1141 = vpow.pop %v1140
    %v1142 = vmul.f32 %v1116, 1.442695
    %v1143 = vpow.pop %v1142
    %v1144 = vmul.f32 %v1117, 1.442695
    %v1145 = vpow.pop %v1144
    %v1146 = vmul.f32 %v1118, 1.442695
    %v1147 = vpow.pop %v1146
    %v1148 = vmul.f32 %v1119, 1.442695
    %v1149 = vpow.pop %v1148
    %v1150 = vmul.f32 %v1120, 1.442695
    %v1151 = vpow.pop %v1150
    %v1152 = vmul.f32 %v1121, 1.442695
    %v1153 = vpow.pop %v1152
    %v1154 = vsel %vm836, %v1123, 0.0
    %v1155 = vsel %vm837, %v1125, 0.0
    %v1156 = vsel %vm838, %v1127, 0.0
    %v1157 = vsel %vm839, %v1129, 0.0
    %v1158 = vsel %vm840, %v1131, 0.0
    %v1159 = vsel %vm841, %v1133, 0.0
    %v1160 = vsel %vm842, %v1135, 0.0
    %v1161 = vsel %vm843, %v1137, 0.0
    %v1162 = vsel %vm844, %v1139, 0.0
    %v1163 = vsel %vm845, %v1141, 0.0
    %v1164 = vsel %vm846, %v1143, 0.0
    %v1165 = vsel %vm847, %v1145, 0.0
    %v1166 = vsel %vm848, %v1147, 0.0
    %v1167 = vsel %vm849, %v1149, 0.0
    %v1168 = vsel %vm850, %v1151, 0.0
    %v1169 = vsel %vm851, %v1153, 0.0
    %v1170 = vsel %vm1057, %v1154, 0.0
    %1171 = vadd.xlane.f32.xlu0 %v1170
    %v1172 = vpop.xlane.xlu0 %1171
    %v1173 = vsel %vm1057, %v1155, 0.0
    %1174 = vadd.xlane.f32.xlu0 %v1173
    %v1175 = vpop.xlane.xlu0 %1174
    %v1176 = vsel %vm1057, %v1156, 0.0
    %1177 = vadd.xlane.f32.xlu0 %v1176
    %v1178 = vpop.xlane.xlu0 %1177
    %v1179 = vsel %vm1057, %v1157, 0.0
    %1180 = vadd.xlane.f32.xlu0 %v1179
    %v1181 = vpop.xlane.xlu0 %1180
    %v1182 = vsel %vm1057, %v1158, 0.0
    %1183 = vadd.xlane.f32.xlu0 %v1182
    %v1184 = vpop.xlane.xlu0 %1183
    %v1185 = vsel %vm1057, %v1159, 0.0
    %1186 = vadd.xlane.f32.xlu0 %v1185
    %v1187 = vpop.xlane.xlu0 %1186
    %v1188 = vsel %vm1057, %v1160, 0.0
    %1189 = vadd.xlane.f32.xlu0 %v1188
    %v1190 = vpop.xlane.xlu0 %1189
    %v1191 = vsel %vm1057, %v1161, 0.0
    %1192 = vadd.xlane.f32.xlu0 %v1191
    %v1193 = vpop.xlane.xlu0 %1192
    %v1194 = vsel %vm1057, %v1162, 0.0
    %1195 = vadd.xlane.f32.xlu0 %v1194
    %v1196 = vpop.xlane.xlu0 %1195
    %v1197 = vsel %vm1057, %v1163, 0.0
    %1198 = vadd.xlane.f32.xlu0 %v1197
    %v1199 = vpop.xlane.xlu0 %1198
    %v1200 = vsel %vm1057, %v1164, 0.0
    %1201 = vadd.xlane.f32.xlu0 %v1200
    %v1202 = vpop.xlane.xlu0 %1201
    %v1203 = vsel %vm1057, %v1165, 0.0
    %1204 = vadd.xlane.f32.xlu0 %v1203
    %v1205 = vpop.xlane.xlu0 %1204
    %v1206 = vsel %vm1057, %v1166, 0.0
    %1207 = vadd.xlane.f32.xlu0 %v1206
    %v1208 = vpop.xlane.xlu0 %1207
    %v1209 = vsel %vm1057, %v1167, 0.0
    %1210 = vadd.xlane.f32.xlu0 %v1209
    %v1211 = vpop.xlane.xlu0 %1210
    %v1212 = vsel %vm1057, %v1168, 0.0
    %1213 = vadd.xlane.f32.xlu0 %v1212
    %v1214 = vpop.xlane.xlu0 %1213
    %v1215 = vsel %vm1057, %v1169, 0.0
    %1216 = vadd.xlane.f32.xlu0 %v1215
    %v1217 = vpop.xlane.xlu0 %1216
    %v1218 = vmax.f32 %v1172, 1e-30
    %v1219 = vmax.f32 %v1175, 1e-30
    %v1220 = vmax.f32 %v1178, 1e-30
    %v1221 = vmax.f32 %v1181, 1e-30
    %v1222 = vmax.f32 %v1184, 1e-30
    %v1223 = vmax.f32 %v1187, 1e-30
    %v1224 = vmax.f32 %v1190, 1e-30
    %v1225 = vmax.f32 %v1193, 1e-30
    %v1226 = vmax.f32 %v1196, 1e-30
    %v1227 = vmax.f32 %v1199, 1e-30
    %v1228 = vmax.f32 %v1202, 1e-30
    %v1229 = vmax.f32 %v1205, 1e-30
    %v1230 = vmax.f32 %v1208, 1e-30
    %v1231 = vmax.f32 %v1211, 1e-30
    %v1232 = vmax.f32 %v1214, 1e-30
    %v1233 = vmax.f32 %v1217, 1e-30
    %v1234 = vrcp.pop %v1218
    %v1235 = vrcp.pop %v1219
    %v1236 = vrcp.pop %v1220
    %v1237 = vrcp.pop %v1221
    %v1238 = vrcp.pop %v1222
    %v1239 = vrcp.pop %v1223
    %v1240 = vrcp.pop %v1224
    %v1241 = vrcp.pop %v1225
    %v1242 = vrcp.pop %v1226
    %v1243 = vrcp.pop %v1227
    %v1244 = vrcp.pop %v1228
    %v1245 = vrcp.pop %v1229
    %v1246 = vrcp.pop %v1230
    %v1247 = vrcp.pop %v1231
    %v1248 = vrcp.pop %v1232
    %v1249 = vrcp.pop %v1233
    %v1250 = vmul.f32 %v1154, %v1234
    %v1251 = vmul.f32 %v1155, %v1235
    %v1252 = vmul.f32 %v1156, %v1236
    %v1253 = vmul.f32 %v1157, %v1237
    %v1254 = vmul.f32 %v1158, %v1238
    %v1255 = vmul.f32 %v1159, %v1239
    %v1256 = vmul.f32 %v1160, %v1240
    %v1257 = vmul.f32 %v1161, %v1241
    %v1258 = vmul.f32 %v1162, %v1242
    %v1259 = vmul.f32 %v1163, %v1243
    %v1260 = vmul.f32 %v1164, %v1244
    %v1261 = vmul.f32 %v1165, %v1245
    %v1262 = vmul.f32 %v1166, %v1246
    %v1263 = vmul.f32 %v1167, %v1247
    %v1264 = vmul.f32 %v1168, %v1248
    %v1265 = vmul.f32 %v1169, %v1249
    %v1266 = vpack.c.bf16 %v1251, %v1250
    %v1267 = vpack.c.bf16 %v1253, %v1252
    %v1268 = vpack.c.bf16 %v1255, %v1254
    %v1269 = vpack.c.bf16 %v1257, %v1256
    %v1270 = vpack.c.bf16 %v1259, %v1258
    %v1271 = vpack.c.bf16 %v1261, %v1260
    %v1272 = vpack.c.bf16 %v1263, %v1262
    %v1273 = vpack.c.bf16 %v1265, %v1264
    %v1275 = vsel %vm1057, %v1266, 0
    %v1278 = vsel %vm1057, %v1267, 0
    %v1281 = vsel %vm1057, %v1268, 0
    %v1284 = vsel %vm1057, %v1269, 0
    %v1287 = vsel %vm1057, %v1270, 0
    %v1290 = vsel %vm1057, %v1271, 0
    %v1293 = vsel %vm1057, %v1272, 0
    %v1296 = vsel %vm1057, %v1273, 0
    %1298 = vmatprep.subr.bf16.mxu0 0
    %1299 = vmatpush1.bf16.msra.mxu0 0
    %1300 = vmatprep.subr.bf16.mxu0 0
    %1301 = vmatpush1.bf16.msra.mxu0 0
    %1302 = vmatprep.subr.bf16.mxu0 0
    %1303 = vmatpush1.bf16.msra.mxu0 0
    %1304 = vmatprep.subr.bf16.mxu0 0
    %1305 = vmatpush1.bf16.msra.mxu0 0
    %1306 = vmatprep.subr.bf16.mxu0 0
    %1307 = vmatpush1.bf16.msra.mxu0 %v548
    %1308 = vmatprep.subr.bf16.mxu0 0
    %1309 = vmatpush1.bf16.msra.mxu0 %v547
    %1310 = vmatprep.subr.bf16.mxu0 0
    %1311 = vmatpush1.bf16.msra.mxu0 %v546
    %1312 = vmatprep.subr.bf16.mxu0 0
    %1313 = vmatpush1.bf16.msra.mxu0 %v545
    %1314 = vmatprep.subr.bf16.mxu0 0
    %1315 = vmatpush2.bf16.msra.mxu0 0
    %1316 = vmatprep.subr.bf16.mxu0 0
    %1317 = vmatpush2.bf16.msra.mxu0 0
    %1318 = vmatprep.subr.bf16.mxu0 0
    %1319 = vmatpush2.bf16.msra.mxu0 0
    %1320 = vmatprep.subr.bf16.mxu0 0
    %1321 = vmatpush2.bf16.msra.mxu0 0
    %1322 = vmatprep.subr.bf16.mxu0 0
    %1323 = vmatpush2.bf16.msra.mxu0 0
    %1324 = vmatprep.subr.bf16.mxu0 0
    %1325 = vmatpush2.bf16.msra.mxu0 0
    %1326 = vmatprep.subr.bf16.mxu0 0
    %1327 = vmatpush2.bf16.msra.mxu0 0
    %1328 = vmatprep.subr.bf16.mxu0 0
    %1329 = vmatpush2.bf16.msra.mxu0 0
    %1330 = vmatprep.mubr.bf16.mxu0 0
    %1331 = vmatmul.mubr.bf16.gmra.mxu0 %v1275
    %v1332 = vpop.f32.mrf.mxu0
    %v1333 = vadd.f32 0.0, %v1332
    %v1334 = vpop.f32.mrf.mxu0
    %v1335 = vpop.f32.mrf.mxu0
    %v1336 = vadd.f32 0.0, %v1335
    %v1337 = vpop.f32.mrf.mxu0
    %1338 = vmatprep.mubr.bf16.mxu0 0
    %1339 = vmatmul.mubr.bf16.gmra.mxu0 %v1278
    %v1340 = vpop.f32.mrf.mxu0
    %v1341 = vadd.f32 0.0, %v1340
    %v1342 = vpop.f32.mrf.mxu0
    %v1343 = vpop.f32.mrf.mxu0
    %v1344 = vadd.f32 0.0, %v1343
    %v1345 = vpop.f32.mrf.mxu0
    %1346 = vmatprep.mubr.bf16.mxu0 0
    %1347 = vmatmul.mubr.bf16.gmra.mxu0 %v1281
    %v1348 = vpop.f32.mrf.mxu0
    %v1349 = vadd.f32 0.0, %v1348
    %v1350 = vpop.f32.mrf.mxu0
    %v1351 = vpop.f32.mrf.mxu0
    %v1352 = vadd.f32 0.0, %v1351
    %v1353 = vpop.f32.mrf.mxu0
    %1354 = vmatprep.mubr.bf16.mxu0 0
    %1355 = vmatmul.mubr.bf16.gmra.mxu0 %v1284
    %v1356 = vpop.f32.mrf.mxu0
    %v1357 = vadd.f32 0.0, %v1356
    %v1358 = vpop.f32.mrf.mxu0
    %v1359 = vpop.f32.mrf.mxu0
    %v1360 = vadd.f32 0.0, %v1359
    %v1361 = vpop.f32.mrf.mxu0
    %1362 = vmatprep.mubr.bf16.mxu0 0
    %1363 = vmatmul.mubr.bf16.gmra.mxu0 %v1287
    %v1364 = vpop.f32.mrf.mxu0
    %v1365 = vadd.f32 0.0, %v1364
    %v1366 = vpop.f32.mrf.mxu0
    %v1367 = vpop.f32.mrf.mxu0
    %v1368 = vadd.f32 0.0, %v1367
    %v1369 = vpop.f32.mrf.mxu0
    %1370 = vmatprep.mubr.bf16.mxu0 0
    %1371 = vmatmul.mubr.bf16.gmra.mxu0 %v1290
    %v1372 = vpop.f32.mrf.mxu0
    %v1373 = vadd.f32 0.0, %v1372
    %v1374 = vpop.f32.mrf.mxu0
    %v1375 = vpop.f32.mrf.mxu0
    %v1376 = vadd.f32 0.0, %v1375
    %v1377 = vpop.f32.mrf.mxu0
    %1378 = vmatprep.mubr.bf16.mxu0 0
    %1379 = vmatmul.mubr.bf16.gmra.mxu0 %v1293
    %v1380 = vpop.f32.mrf.mxu0
    %v1381 = vadd.f32 0.0, %v1380
    %v1382 = vpop.f32.mrf.mxu0
    %v1383 = vpop.f32.mrf.mxu0
    %v1384 = vadd.f32 0.0, %v1383
    %v1385 = vpop.f32.mrf.mxu0
    %1386 = vmatprep.mubr.bf16.mxu0 0
    %1387 = vmatmul.mubr.bf16.gmra.mxu0 %v1296
    %v1388 = vpop.f32.mrf.mxu0
    %v1389 = vadd.f32 0.0, %v1388
    %v1390 = vpop.f32.mrf.mxu0
    %v1391 = vpop.f32.mrf.mxu0
    %v1392 = vadd.f32 0.0, %v1391
    %v1393 = vpop.f32.mrf.mxu0
    %1394 = vdwg.mxu0
    %v1395 = vlaneseq
    %v1396 = vand.u32 %v1395, 127
    %vm1397 = vcmp.ge.s32.totalorder %v1396, 0
    %vm1398 = vcmp.lt.s32.totalorder %v1396, 4
    %vm1399 = vmand %vm1397, %vm1398
    %v1400 = vsel %vm1399, 1, 0
    %vm1401 = vcmp.eq.s32.totalorder %v1400, 1
    %v1402 = vsel %vm1401, %v1333, 0.0
    %v1403 = vsel %vm1401, %v1336, 0.0
    %v1404 = vadd.f32 %v1402, 0.0
    %v1405 = vadd.f32 %v1403, 0.0
    %vm1406 = vcmp.ge.s32.totalorder %v1396, 4
    %vm1407 = vcmp.lt.s32.totalorder %v1396, 8
    %vm1408 = vmand %vm1406, %vm1407
    %v1409 = vsel %vm1408, 1, 0
    %vm1410 = vcmp.eq.s32.totalorder %v1409, 1
    %v1411 = vsel %vm1410, %v1341, 0.0
    %v1412 = vsel %vm1410, %v1344, 0.0
    %v1413 = vadd.f32 %v1404, %v1411
    %v1414 = vadd.f32 %v1405, %v1412
    %vm1415 = vcmp.ge.s32.totalorder %v1396, 8
    %vm1416 = vcmp.lt.s32.totalorder %v1396, 12
    %vm1417 = vmand %vm1415, %vm1416
    %v1418 = vsel %vm1417, 1, 0
    %vm1419 = vcmp.eq.s32.totalorder %v1418, 1
    %v1420 = vsel %vm1419, %v1349, 0.0
    %v1421 = vsel %vm1419, %v1352, 0.0
    %v1422 = vadd.f32 %v1413, %v1420
    %v1423 = vadd.f32 %v1414, %v1421
    %vm1424 = vcmp.ge.s32.totalorder %v1396, 12
    %vm1425 = vcmp.lt.s32.totalorder %v1396, 16
    %vm1426 = vmand %vm1424, %vm1425
    %v1427 = vsel %vm1426, 1, 0
    %vm1428 = vcmp.eq.s32.totalorder %v1427, 1
    %v1429 = vsel %vm1428, %v1357, 0.0
    %v1430 = vsel %vm1428, %v1360, 0.0
    %v1431 = vadd.f32 %v1422, %v1429
    %v1432 = vadd.f32 %v1423, %v1430
    %vm1433 = vcmp.ge.s32.totalorder %v1396, 16
    %vm1434 = vcmp.lt.s32.totalorder %v1396, 20
    %vm1435 = vmand %vm1433, %vm1434
    %v1436 = vsel %vm1435, 1, 0
    %vm1437 = vcmp.eq.s32.totalorder %v1436, 1
    %v1438 = vsel %vm1437, %v1365, 0.0
    %v1439 = vsel %vm1437, %v1368, 0.0
    %v1440 = vadd.f32 %v1431, %v1438
    %v1441 = vadd.f32 %v1432, %v1439
    %vm1442 = vcmp.ge.s32.totalorder %v1396, 20
    %vm1443 = vcmp.lt.s32.totalorder %v1396, 24
    %vm1444 = vmand %vm1442, %vm1443
    %v1445 = vsel %vm1444, 1, 0
    %vm1446 = vcmp.eq.s32.totalorder %v1445, 1
    %v1447 = vsel %vm1446, %v1373, 0.0
    %v1448 = vsel %vm1446, %v1376, 0.0
    %v1449 = vadd.f32 %v1440, %v1447
    %v1450 = vadd.f32 %v1441, %v1448
    %vm1451 = vcmp.ge.s32.totalorder %v1396, 24
    %vm1452 = vcmp.lt.s32.totalorder %v1396, 28
    %vm1453 = vmand %vm1451, %vm1452
    %v1454 = vsel %vm1453, 1, 0
    %vm1455 = vcmp.eq.s32.totalorder %v1454, 1
    %v1456 = vsel %vm1455, %v1381, 0.0
    %v1457 = vsel %vm1455, %v1384, 0.0
    %v1458 = vadd.f32 %v1449, %v1456
    %v1459 = vadd.f32 %v1450, %v1457
    %vm1460 = vcmp.ge.s32.totalorder %v1396, 28
    %vm1461 = vcmp.lt.s32.totalorder %v1396, 32
    %vm1462 = vmand %vm1460, %vm1461
    %v1463 = vsel %vm1462, 1, 0
    %vm1464 = vcmp.eq.s32.totalorder %v1463, 1
    %v1465 = vsel %vm1464, %v1389, 0.0
    %v1466 = vsel %vm1464, %v1392, 0.0
    %v1467 = vadd.f32 %v1458, %v1465
    %v1468 = vadd.f32 %v1459, %v1466
    %v1469 = vpack.c.bf16 %v1468, %v1467
    %v1470 = vld [vmem:[%s9] sm:$0xf]
    %v1471 = vld [vmem:[%s9 + $0x4] sm:$0xf]
    %v1472 = vld [vmem:[%s9 + $0x8] sm:$0xf]
    %v1473 = vld [vmem:[%s9 + $0xc] sm:$0xf]
    %v1478 = vunpack.c.l.b16 %v1470
    %v1479 = vunpack.c.l.b16 %v1471
    %v1480 = vunpack.c.l.b16 %v1472
    %v1481 = vunpack.c.l.b16 %v1473
    %v1482 = vpack.c.b16 %v1479, %v1478
    %v1483 = vpack.c.b16 %v1481, %v1480
    %v1487 = vsel %vm146, %v1469, 0
    %1489 = vmatprep.subr.bf16.mxu0 0
    %1490 = vmatpush1.bf16.msra.mxu0 0
    %1491 = vmatprep.subr.bf16.mxu0 0
    %1492 = vmatpush1.bf16.msra.mxu0 0
    %1493 = vmatprep.subr.bf16.mxu0 0
    %1494 = vmatpush1.bf16.msra.mxu0 0
    %1495 = vmatprep.subr.bf16.mxu0 0
    %1496 = vmatpush1.bf16.msra.mxu0 0
    %1497 = vmatprep.subr.bf16.mxu0 0
    %1498 = vmatpush1.bf16.msra.mxu0 0
    %1499 = vmatprep.subr.bf16.mxu0 0
    %1500 = vmatpush1.bf16.msra.mxu0 0
    %1501 = vmatprep.subr.bf16.mxu0 0
    %1502 = vmatpush1.bf16.msra.mxu0 %v1483
    %1503 = vmatprep.subr.bf16.mxu0 0
    %1504 = vmatpush1.bf16.msra.mxu0 %v1482
    %1505 = vmatprep.subr.bf16.mxu0 0
    %1506 = vmatpush2.bf16.msra.mxu0 0
    %1507 = vmatprep.subr.bf16.mxu0 0
    %1508 = vmatpush2.bf16.msra.mxu0 0
    %1509 = vmatprep.subr.bf16.mxu0 0
    %1510 = vmatpush2.bf16.msra.mxu0 0
    %1511 = vmatprep.subr.bf16.mxu0 0
    %1512 = vmatpush2.bf16.msra.mxu0 0
    %1513 = vmatprep.subr.bf16.mxu0 0
    %1514 = vmatpush2.bf16.msra.mxu0 0
    %1515 = vmatprep.subr.bf16.mxu0 0
    %1516 = vmatpush2.bf16.msra.mxu0 0
    %1517 = vmatprep.subr.bf16.mxu0 0
    %1518 = vmatpush2.bf16.msra.mxu0 0
    %1519 = vmatprep.subr.bf16.mxu0 0
    %1520 = vmatpush2.bf16.msra.mxu0 0
    %1521 = vmatprep.mubr.bf16.mxu0 0
    %1522 = vmatmul.mubr.bf16.gmra.mxu0 %v1487
    %v1523 = vpop.f32.mrf.mxu0
    %v1524 = vadd.f32 0.0, %v1523
    %v1525 = vpop.f32.mrf.mxu0
    %v1526 = vpop.f32.mrf.mxu0
    %v1527 = vadd.f32 0.0, %v1526
    %v1528 = vpop.f32.mrf.mxu0
    %1529 = vdwg.mxu0
    %v1530 = vadd.f32 %v84, %v1524
    %v1531 = vadd.f32 %v85, %v1527
    %v1532 = vld [vmem:[%s18] sm:$0x1]
    %v1533 = vld [vmem:[%s19] sm:$0x1]
    %v1534 = vsel %vm146, %v1530, 0.0
    %1535 = vadd.xlane.f32.xlu0 %v1534
    %v1536 = vpop.xlane.xlu0 %1535
    %v1537 = vsel %vm146, %v1531, 0.0
    %1538 = vadd.xlane.f32.xlu0 %v1537
    %v1539 = vpop.xlane.xlu0 %1538
    %v1540 = vrcp.pop 32.0
    %v1541 = vmul.f32 %v1536, %v1540
    %v1542 = vmul.f32 %v1539, %v1540
    %v1543 = vsub.f32 %v1530, %v1541
    %v1544 = vsub.f32 %v1531, %v1542
    %v1545 = vmul.f32 %v1543, %v1543
    %v1546 = vmul.f32 %v1544, %v1544
    %v1547 = vsel %vm146, %v1545, 0.0
    %1548 = vadd.xlane.f32.xlu0 %v1547
    %v1549 = vpop.xlane.xlu0 %1548
    %v1550 = vsel %vm146, %v1546, 0.0
    %1551 = vadd.xlane.f32.xlu0 %v1550
    %v1552 = vpop.xlane.xlu0 %1551
    %v1553 = vmul.f32 %v1549, %v1540
    %v1554 = vmul.f32 %v1552, %v1540
    %v1555 = vadd.f32 %v1553, 1e-06
    %v1556 = vadd.f32 %v1554, 1e-06
    %v1557 = vrsqrt.pop %v1555
    %v1558 = vrsqrt.pop %v1556
    %v1559 = vmul.f32 %v1543, %v1557
    %v1560 = vmul.f32 %v1544, %v1558
    %v1562 = vlaneseq
    %v1563 = vshrl.u32 %v1562, 7
    %v1564 = vsub.s32 0, %v1563
    %v1565 = vrot.slane %v1532, %v1564
    %v1567 = vmul.f32 %v1559, %v1565
    %v1568 = vmul.f32 %v1560, %v1565
    %v1570 = vlaneseq
    %v1571 = vshrl.u32 %v1570, 7
    %v1572 = vsub.s32 0, %v1571
    %v1573 = vrot.slane %v1533, %v1572
    %v1575 = vadd.f32 %v1567, %v1573
    %v1576 = vadd.f32 %v1568, %v1573
    %v1577 = vld [vmem:[%s14] sm:$0xf]
    %v1578 = vld [vmem:[%s14 + $0x4] sm:$0xf]
    %v1579 = vld [vmem:[%s14 + $0x8] sm:$0xf]
    %v1580 = vld [vmem:[%s14 + $0xc] sm:$0xf]
    %v1581 = vld [vmem:[%s15] sm:$0x1]
    %v1582 = vld [vmem:[%s16] sm:$0xf]
    %v1583 = vld [vmem:[%s16 + $0x4] sm:$0xf]
    %v1584 = vld [vmem:[%s16 + $0x8] sm:$0xf]
    %v1585 = vld [vmem:[%s16 + $0xc] sm:$0xf]
    %v1586 = vld [vmem:[%s16 + $0x10] sm:$0xf]
    %v1587 = vld [vmem:[%s16 + $0x14] sm:$0xf]
    %v1588 = vld [vmem:[%s16 + $0x18] sm:$0xf]
    %v1589 = vld [vmem:[%s16 + $0x1c] sm:$0xf]
    %v1590 = vld [vmem:[%s16 + $0x20] sm:$0xf]
    %v1591 = vld [vmem:[%s16 + $0x24] sm:$0xf]
    %v1592 = vld [vmem:[%s16 + $0x28] sm:$0xf]
    %v1593 = vld [vmem:[%s16 + $0x2c] sm:$0xf]
    %v1594 = vld [vmem:[%s16 + $0x30] sm:$0xf]
    %v1595 = vld [vmem:[%s16 + $0x34] sm:$0xf]
    %v1596 = vld [vmem:[%s16 + $0x38] sm:$0xf]
    %v1597 = vld [vmem:[%s16 + $0x3c] sm:$0xf]
    %v1598 = vld [vmem:[%s17] sm:$0x1]
    %v1599 = vpack.c.bf16 %v1576, %v1575
    %v1601 = vlaneseq
    %v1602 = vshrl.u32 %v1601, 7
    %v1603 = vsub.s32 0, %v1602
    %v1604 = vrot.slane %v1581, %v1603
    %v1610 = vunpack.c.l.b16 %v1577
    %v1611 = vunpack.c.l.b16 %v1578
    %v1612 = vunpack.c.l.b16 %v1579
    %v1613 = vunpack.c.l.b16 %v1580
    %v1614 = vpack.c.b16 %v1611, %v1610
    %v1615 = vpack.c.b16 %v1613, %v1612
    %v1619 = vsel %vm146, %v1599, 0
    %1621 = vmatprep.subr.bf16.mxu0 0
    %1622 = vmatpush1.bf16.msra.mxu0 0
    %1623 = vmatprep.subr.bf16.mxu0 0
    %1624 = vmatpush1.bf16.msra.mxu0 0
    %1625 = vmatprep.subr.bf16.mxu0 0
    %1626 = vmatpush1.bf16.msra.mxu0 0
    %1627 = vmatprep.subr.bf16.mxu0 0
    %1628 = vmatpush1.bf16.msra.mxu0 0
    %1629 = vmatprep.subr.bf16.mxu0 0
    %1630 = vmatpush1.bf16.msra.mxu0 0
    %1631 = vmatprep.subr.bf16.mxu0 0
    %1632 = vmatpush1.bf16.msra.mxu0 0
    %1633 = vmatprep.subr.bf16.mxu0 0
    %1634 = vmatpush1.bf16.msra.mxu0 %v1615
    %1635 = vmatprep.subr.bf16.mxu0 0
    %1636 = vmatpush1.bf16.msra.mxu0 %v1614
    %1637 = vmatprep.subr.bf16.mxu0 0
    %1638 = vmatpush2.bf16.msra.mxu0 0
    %1639 = vmatprep.subr.bf16.mxu0 0
    %1640 = vmatpush2.bf16.msra.mxu0 0
    %1641 = vmatprep.subr.bf16.mxu0 0
    %1642 = vmatpush2.bf16.msra.mxu0 0
    %1643 = vmatprep.subr.bf16.mxu0 0
    %1644 = vmatpush2.bf16.msra.mxu0 0
    %1645 = vmatprep.subr.bf16.mxu0 0
    %1646 = vmatpush2.bf16.msra.mxu0 0
    %1647 = vmatprep.subr.bf16.mxu0 0
    %1648 = vmatpush2.bf16.msra.mxu0 0
    %1649 = vmatprep.subr.bf16.mxu0 0
    %1650 = vmatpush2.bf16.msra.mxu0 0
    %1651 = vmatprep.subr.bf16.mxu0 0
    %1652 = vmatpush2.bf16.msra.mxu0 0
    %1653 = vmatprep.mubr.bf16.mxu0 0
    %1654 = vmatmul.mubr.bf16.gmra.mxu0 %v1619
    %v1655 = vpop.f32.mrf.mxu0
    %v1656 = vadd.f32 %v1604, %v1655
    %v1657 = vpop.f32.mrf.mxu0
    %v1658 = vpop.f32.mrf.mxu0
    %v1659 = vadd.f32 %v1604, %v1658
    %v1660 = vpop.f32.mrf.mxu0
    %1661 = vdwg.mxu0
    %v1662 = vmul.f32 %v1656, 0.2
    %v1663 = vmul.f32 %v1659, 0.2
    %v1664 = vmax.f32 %v1656, %v1662
    %v1665 = vmax.f32 %v1659, %v1663
    %v1666 = vpack.c.bf16 %v1665, %v1664
    %v1668 = vlaneseq
    %v1669 = vshrl.u32 %v1668, 7
    %v1670 = vsub.s32 0, %v1669
    %v1671 = vrot.slane %v1598, %v1670
    %v1689 = vunpack.c.l.b16 %v1582
    %v1690 = vunpack.c.l.b16 %v1583
    %v1691 = vunpack.c.l.b16 %v1584
    %v1692 = vunpack.c.l.b16 %v1585
    %v1693 = vunpack.c.l.b16 %v1586
    %v1694 = vunpack.c.l.b16 %v1587
    %v1695 = vunpack.c.l.b16 %v1588
    %v1696 = vunpack.c.l.b16 %v1589
    %v1697 = vunpack.c.l.b16 %v1590
    %v1698 = vunpack.c.l.b16 %v1591
    %v1699 = vunpack.c.l.b16 %v1592
    %v1700 = vunpack.c.l.b16 %v1593
    %v1701 = vunpack.c.l.b16 %v1594
    %v1702 = vunpack.c.l.b16 %v1595
    %v1703 = vunpack.c.l.b16 %v1596
    %v1704 = vunpack.c.l.b16 %v1597
    %v1705 = vpack.c.b16 %v1690, %v1689
    %v1706 = vpack.c.b16 %v1692, %v1691
    %v1707 = vpack.c.b16 %v1694, %v1693
    %v1708 = vpack.c.b16 %v1696, %v1695
    %v1709 = vpack.c.b16 %v1698, %v1697
    %v1710 = vpack.c.b16 %v1700, %v1699
    %v1711 = vpack.c.b16 %v1702, %v1701
    %v1712 = vpack.c.b16 %v1704, %v1703
    %1721 = vmatprep.subr.bf16.mxu0 0
    %1722 = vmatpush1.bf16.msra.mxu0 %v1712
    %1723 = vmatprep.subr.bf16.mxu0 0
    %1724 = vmatpush1.bf16.msra.mxu0 %v1711
    %1725 = vmatprep.subr.bf16.mxu0 0
    %1726 = vmatpush1.bf16.msra.mxu0 %v1710
    %1727 = vmatprep.subr.bf16.mxu0 0
    %1728 = vmatpush1.bf16.msra.mxu0 %v1709
    %1729 = vmatprep.subr.bf16.mxu0 0
    %1730 = vmatpush1.bf16.msra.mxu0 %v1708
    %1731 = vmatprep.subr.bf16.mxu0 0
    %1732 = vmatpush1.bf16.msra.mxu0 %v1707
    %1733 = vmatprep.subr.bf16.mxu0 0
    %1734 = vmatpush1.bf16.msra.mxu0 %v1706
    %1735 = vmatprep.subr.bf16.mxu0 0
    %1736 = vmatpush1.bf16.msra.mxu0 %v1705
    %1737 = vmatprep.subr.bf16.mxu0 0
    %1738 = vmatpush2.bf16.msra.mxu0 0
    %1739 = vmatprep.subr.bf16.mxu0 0
    %1740 = vmatpush2.bf16.msra.mxu0 0
    %1741 = vmatprep.subr.bf16.mxu0 0
    %1742 = vmatpush2.bf16.msra.mxu0 0
    %1743 = vmatprep.subr.bf16.mxu0 0
    %1744 = vmatpush2.bf16.msra.mxu0 0
    %1745 = vmatprep.subr.bf16.mxu0 0
    %1746 = vmatpush2.bf16.msra.mxu0 0
    %1747 = vmatprep.subr.bf16.mxu0 0
    %1748 = vmatpush2.bf16.msra.mxu0 0
    %1749 = vmatprep.subr.bf16.mxu0 0
    %1750 = vmatpush2.bf16.msra.mxu0 0
    %1751 = vmatprep.subr.bf16.mxu0 0
    %1752 = vmatpush2.bf16.msra.mxu0 0
    %1753 = vmatprep.mubr.bf16.mxu0 0
    %1754 = vmatmul.mubr.bf16.gmra.mxu0 %v1666
    %v1755 = vpop.f32.mrf.mxu0
    %v1756 = vadd.f32 %v1671, %v1755
    %v1757 = vpop.f32.mrf.mxu0
    %v1758 = vpop.f32.mrf.mxu0
    %v1759 = vadd.f32 %v1671, %v1758
    %v1760 = vpop.f32.mrf.mxu0
    %1761 = vdwg.mxu0
    %v1762 = vadd.f32 %v1575, %v1756
    %v1763 = vadd.f32 %v1576, %v1759
    %v1764 = vld [vmem:[%s20] sm:$0x1]
    %v1765 = vld [vmem:[%s21] sm:$0x1]
    %v1766 = vsel %vm146, %v1762, 0.0
    %1767 = vadd.xlane.f32.xlu0 %v1766
    %v1768 = vpop.xlane.xlu0 %1767
    %v1769 = vsel %vm146, %v1763, 0.0
    %1770 = vadd.xlane.f32.xlu0 %v1769
    %v1771 = vpop.xlane.xlu0 %1770
    %v1772 = vmul.f32 %v1768, %v1540
    %v1773 = vmul.f32 %v1771, %v1540
    %v1774 = vsub.f32 %v1762, %v1772
    %v1775 = vsub.f32 %v1763, %v1773
    %v1776 = vmul.f32 %v1774, %v1774
    %v1777 = vmul.f32 %v1775, %v1775
    %v1778 = vsel %vm146, %v1776, 0.0
    %1779 = vadd.xlane.f32.xlu0 %v1778
    %v1780 = vpop.xlane.xlu0 %1779
    %v1781 = vsel %vm146, %v1777, 0.0
    %1782 = vadd.xlane.f32.xlu0 %v1781
    %v1783 = vpop.xlane.xlu0 %1782
    %v1784 = vmul.f32 %v1780, %v1540
    %v1785 = vmul.f32 %v1783, %v1540
    %v1786 = vadd.f32 %v1784, 1e-06
    %v1787 = vadd.f32 %v1785, 1e-06
    %v1788 = vrsqrt.pop %v1786
    %v1789 = vrsqrt.pop %v1787
    %v1790 = vmul.f32 %v1774, %v1788
    %v1791 = vmul.f32 %v1775, %v1789
    %v1793 = vlaneseq
    %v1794 = vshrl.u32 %v1793, 7
    %v1795 = vsub.s32 0, %v1794
    %v1796 = vrot.slane %v1764, %v1795
    %v1798 = vmul.f32 %v1790, %v1796
    %v1799 = vmul.f32 %v1791, %v1796
    %v1801 = vlaneseq
    %v1802 = vshrl.u32 %v1801, 7
    %v1803 = vsub.s32 0, %v1802
    %v1804 = vrot.slane %v1765, %v1803
    %v1806 = vadd.f32 %v1798, %v1804
    %v1807 = vadd.f32 %v1799, %v1804
    %v1808 = vpack.c.bf16 %v1807, %v1806
    %v1809 = vld [vmem:[%s22] sm:$0xf]
    %v1810 = vld [vmem:[%s22 + $0x4] sm:$0xf]
    %v1811 = vld [vmem:[%s22 + $0x8] sm:$0xf]
    %v1812 = vld [vmem:[%s22 + $0xc] sm:$0xf]
    %v1817 = vunpack.c.l.b16 %v1809
    %v1818 = vunpack.c.l.b16 %v1810
    %v1819 = vunpack.c.l.b16 %v1811
    %v1820 = vunpack.c.l.b16 %v1812
    %v1821 = vpack.c.b16 %v1818, %v1817
    %v1822 = vpack.c.b16 %v1820, %v1819
    %v1826 = vsel %vm146, %v1808, 0
    %1828 = vmatprep.subr.bf16.mxu0 0
    %1829 = vmatpush1.bf16.msra.mxu0 0
    %1830 = vmatprep.subr.bf16.mxu0 0
    %1831 = vmatpush1.bf16.msra.mxu0 0
    %1832 = vmatprep.subr.bf16.mxu0 0
    %1833 = vmatpush1.bf16.msra.mxu0 0
    %1834 = vmatprep.subr.bf16.mxu0 0
    %1835 = vmatpush1.bf16.msra.mxu0 0
    %1836 = vmatprep.subr.bf16.mxu0 0
    %1837 = vmatpush1.bf16.msra.mxu0 0
    %1838 = vmatprep.subr.bf16.mxu0 0
    %1839 = vmatpush1.bf16.msra.mxu0 0
    %1840 = vmatprep.subr.bf16.mxu0 0
    %1841 = vmatpush1.bf16.msra.mxu0 %v1822
    %1842 = vmatprep.subr.bf16.mxu0 0
    %1843 = vmatpush1.bf16.msra.mxu0 %v1821
    %1844 = vmatprep.subr.bf16.mxu0 0
    %1845 = vmatpush2.bf16.msra.mxu0 0
    %1846 = vmatprep.subr.bf16.mxu0 0
    %1847 = vmatpush2.bf16.msra.mxu0 0
    %1848 = vmatprep.subr.bf16.mxu0 0
    %1849 = vmatpush2.bf16.msra.mxu0 0
    %1850 = vmatprep.subr.bf16.mxu0 0
    %1851 = vmatpush2.bf16.msra.mxu0 0
    %1852 = vmatprep.subr.bf16.mxu0 0
    %1853 = vmatpush2.bf16.msra.mxu0 0
    %1854 = vmatprep.subr.bf16.mxu0 0
    %1855 = vmatpush2.bf16.msra.mxu0 0
    %1856 = vmatprep.subr.bf16.mxu0 0
    %1857 = vmatpush2.bf16.msra.mxu0 0
    %1858 = vmatprep.subr.bf16.mxu0 0
    %1859 = vmatpush2.bf16.msra.mxu0 0
    %1860 = vmatprep.mubr.bf16.mxu0 0
    %1861 = vmatmul.mubr.bf16.gmra.mxu0 %v1826
    %v1862 = vpop.f32.mrf.mxu0
    %v1863 = vadd.f32 0.0, %v1862
    %v1864 = vpop.f32.mrf.mxu0
    %v1865 = vpop.f32.mrf.mxu0
    %v1866 = vadd.f32 0.0, %v1865
    %v1867 = vpop.f32.mrf.mxu0
    %1868 = vdwg.mxu0
    %v1869 = vpack.c.bf16 %v1866, %v1863
    %v1871 = vunpack.c.l.b16 %v1869
    %v1872 = vunpack.c.h.b16 %v1869
    %v1873 = vpack.c.b16 %v1871, %v1871
    %v1874 = vpack.c.b16 %v1872, %v1872
    %1877 = vst [vmem:[#allocation2] sm:$0xf] %v1873
    %1878 = vst [vmem:[#allocation2 + $0x4] sm:$0xf] %v1874
    // Predicated region
    $region94: #{tpu_custom_call.1} parent=1 // pred_check
      _
    $region95: #{tpu_custom_call.1} parent=1 // pred_check_branch
      %1880 = sbr.rel (0) target = $region97
    $region96: #{tpu_custom_call.1} parent=1 // pred_region
      %s1882 = ssub.s32 128, 128
      %1883 = vsyncadd [#allocation3], %s1882
      %s1884 = sshll.u32 [#allocation2], 4
      %s1885 = int_to_ptr.vmem [resolvable:$true] %s1884
      %1890 = dma.vmem_to_hbm [thread:$0]  %s1885, 128, %s23, [#allocation3], 64, 64, 4
    $region97: #{tpu_custom_call.1} parent=1 // pred_fallthru
      _
    // Predicated region
    $region98: #{tpu_custom_call.1} parent=1 // pred_check
      _
    $region99: #{tpu_custom_call.1} parent=1 // pred_check_branch
      %1892 = sbr.rel (0) target = $region101
    $region100: #{tpu_custom_call.1} parent=1 // pred_region
      %1893 = dma.done [#allocation3], 128
    $region101: #{tpu_custom_call.1} parent=1 // pred_fallthru
      _
    %1894 = vsyncpa [#allocation3], 1

</llo_original>
